<compile_context>
chip_gen: v5e
topology: v5e:2x2
jax: 0.10.0
libtpu: 0.0.40
codegen_flags: <defaults>
</compile_context>

<pallas_src>
import jax
import jax.numpy as jnp
from jax.experimental import pallas as pl
from jax.experimental.pallas import tpu as pltpu

V_TILE = 512          # vocab tile width (lane-aligned); sweep 512-2048 at real vocab sizes
_NEG_BIG = -1e30      # f32 bias for padded vocab columns -> exp() underflows to exactly 0
                      # NOTE: must stay f32; casting b_out to bf16 would make this -inf.


def _round_up(x, m):
    return (x + m - 1) // m * m


def _vocab_tiling(v):
    """(tile_width, padded_vocab) such that padded_vocab % tile_width == 0."""
    tile = min(V_TILE, _round_up(v, 128))
    return tile, _round_up(v, tile)


def _spec(shape, index_map, buffers=None):
    """BlockSpec, optionally with an explicit buffer count (single-buffer residents,
    double-buffer the streamed w_out).  Falls back to a plain BlockSpec if this JAX
    version has no pipeline_mode / pl.Buffered."""
    if buffers is not None:
        try:
            return pl.BlockSpec(shape, index_map, pipeline_mode=pl.Buffered(buffers))
        except Exception:  # pragma: no cover - older/newer API without pipeline_mode
            pass
    return pl.BlockSpec(shape, index_map)


def _vmem_limit_bytes():
    # v5e/v6e: 128 MiB VMEM -> ~90 MiB scoped limit; v7x: 64 MiB -> ~45 MiB.
    try:
        cap = pltpu.get_tpu_info().vmem_capacity_bytes
    except Exception:   # no TPU visible (e.g. interpret mode) -> conservative default
        cap = 64 * 1024 * 1024
    return min(96 * 1024 * 1024, int(cap * 0.7))


def _decoder_kernel(x_ref, h0_ref, enc_ref,
                    w_ih_ref, w_hh_ref, b_ih_ref, b_hh_ref,
                    wc_h_ref, wc_c_ref, b_cat_ref,
                    w_out_ref, b_out_ref,
                    out_ref, h_out_ref,
                    concat_sc):
    """grid = (n_v_tiles,).  Tile 0 additionally runs GRU + attention + concat.
    Every tile computes its slice of the output projection into the resident
    (n_tiles, Bp, TV) logits buffer; the last tile normalizes it in place."""
    j = pl.program_id(0)
    nv = pl.num_programs(0)
    Hp = x_ref.shape[1]

    @pl.when(j == 0)
    def _():
        x = x_ref[...]                       # (Bp, Hp) bf16 embedded token
        h = h0_ref[...]                      # (Bp, Hp) f32 previous hidden

        # ---- GRU cell (PyTorch gate order r, z, n): bf16 MXU dots, f32 gate math ----
        gi = jnp.dot(x, w_ih_ref[...], preferred_element_type=jnp.float32) + b_ih_ref[...]
        gh = jnp.dot(h.astype(jnp.bfloat16), w_hh_ref[...],
                     preferred_element_type=jnp.float32) + b_hh_ref[...]
        r = jax.nn.sigmoid(gi[:, 0:Hp] + gh[:, 0:Hp])
        z = jax.nn.sigmoid(gi[:, Hp:2 * Hp] + gh[:, Hp:2 * Hp])
        n = jnp.tanh(gi[:, 2 * Hp:3 * Hp] + r * gh[:, 2 * Hp:3 * Hp])
        h_new = (1.0 - z) * n + z * h
        h_out_ref[...] = h_new

        # ---- dot attention: MXU einsums (exact softmax over L) ----
        enc = enc_ref[...]                                   # (Bp, L, Hp) bf16
        hq = h_new.astype(jnp.bfloat16)
        scores = jnp.einsum('bqh,blh->bql', hq[:, None, :], enc,
                            preferred_element_type=jnp.float32)        # (Bp, 1, L)
        scores = scores - jnp.max(scores, axis=-1, keepdims=True)
        es = jnp.exp(scores)
        attn = es / jnp.sum(es, axis=-1, keepdims=True)
        ctx = jnp.einsum('bql,blh->bqh', attn.astype(jnp.bfloat16), enc,
                         preferred_element_type=jnp.float32)[:, 0, :]  # (Bp, Hp)

        # ---- concat([h, ctx]) -> Linear -> tanh, split into two (Hp,Hp) halves ----
        pre = (jnp.dot(hq, wc_h_ref[...], preferred_element_type=jnp.float32)
               + jnp.dot(ctx.astype(jnp.bfloat16), wc_c_ref[...],
                         preferred_element_type=jnp.float32)
               + b_cat_ref[...])
        concat_sc[...] = jnp.tanh(pre).astype(concat_sc.dtype)

    # ---- streamed output projection: this vocab tile's logits (single pass) ----
    logits = (jnp.dot(concat_sc[...], w_out_ref[...], preferred_element_type=jnp.float32)
              + b_out_ref[...])                                         # (Bp, TV) f32
    out_ref[j] = logits        # dynamic leading-dim store into the resident buffer

    # ---- epilogue: exact softmax over the whole resident logits buffer ----
    @pl.when(j == nv - 1)
    def _():
        zlog = out_ref[...]                                             # (nv, Bp, TV)
        m = jnp.max(jnp.max(zlog, axis=2, keepdims=True), axis=0, keepdims=True)
        e = jnp.exp(zlog - m)
        s = jnp.sum(jnp.sum(e, axis=2, keepdims=True), axis=0, keepdims=True)
        out_ref[...] = e / s     # exact normalization: rows sum to 1 (no approx recip)


def prepare_params(params):
    """Pad / transpose / cast weights once (lane- & sublane-aligned, bf16 heavy operands)."""
    H = params["embedding"].shape[1]
    V = params["w_out"].shape[0]
    Hp = _round_up(H, 128)
    _, Vp = _vocab_tiling(V)

    def pad2(w, r, c):
        return jnp.pad(w, ((0, r - w.shape[0]), (0, c - w.shape[1])))

    # GRU weights: (3H, H) -> (H, 3H), pad each gate block independently so the kernel's
    # lane-aligned slices [0:Hp], [Hp:2Hp], [2Hp:3Hp] line up with (r, z, n).
    def prep_gru_w(w):
        wt = w.T.reshape(H, 3, H)
        wt = jnp.pad(wt, ((0, Hp - H), (0, 0), (0, Hp - H)))
        return wt.reshape(Hp, 3 * Hp).astype(jnp.bfloat16)

    def prep_gru_b(b):
        bt = jnp.pad(b.reshape(3, H), ((0, 0), (0, Hp - H)))
        return bt.reshape(1, 3 * Hp).astype(jnp.float32)

    wc = params["w_concat"]                                   # (H, 2H): [rnn_output | context]
    return {
        "embedding": jnp.pad(params["embedding"],
                             ((0, 0), (0, Hp - H))).astype(jnp.bfloat16),   # (V, Hp)
        "w_ih": prep_gru_w(params["w_ih"]),
        "w_hh": prep_gru_w(params["w_hh"]),
        "b_ih": prep_gru_b(params["b_ih"]),
        "b_hh": prep_gru_b(params["b_hh"]),
        "wc_h": pad2(wc[:, :H].T, Hp, Hp).astype(jnp.bfloat16),             # (Hp, Hp)
        "wc_c": pad2(wc[:, H:].T, Hp, Hp).astype(jnp.bfloat16),             # (Hp, Hp)
        "b_cat": jnp.pad(params["b_concat"], (0, Hp - H)).reshape(1, Hp).astype(jnp.float32),
        "w_out": pad2(params["w_out"].T, Hp, Vp).astype(jnp.bfloat16),      # (Hp, Vp)
        "b_out": jnp.pad(params["b_out"], (0, Vp - V),
                         constant_values=_NEG_BIG).reshape(1, Vp).astype(jnp.float32),
    }


def prepare_encoder_outputs(encoder_outputs):
    """(L, B, H) f32 -> (Bp, L, Hp) bf16 batch-major.  Hoisted out of the decode step
    so the relayout is paid once per sequence, not once per decode step."""
    L, B, H = encoder_outputs.shape
    Bp, Hp = _round_up(B, 8), _round_up(H, 128)
    enc = jnp.transpose(encoder_outputs, (1, 0, 2))
    enc = jnp.pad(enc, ((0, Bp - B), (0, 0), (0, Hp - H)))
    return enc.astype(jnp.bfloat16)


@jax.jit
def luong_attn_decoder_step(input_step, last_hidden, enc_prepped, prepped):
    """Mirrors LuongAttnDecoderRNN.forward with attn_model='dot', n_layers=1.
    enc_prepped must come from prepare_encoder_outputs()."""
    emb = prepped["embedding"]
    V, Hp = emb.shape
    Vp = prepped["w_out"].shape[1]
    v_tile = min(V_TILE, Vp)
    n_v_tiles = Vp // v_tile
    Bp, L, _ = enc_prepped.shape
    _, B, H = last_hidden.shape

    # glue (plain JAX): embedding lookup (dropout = identity) + pad/align activations.
    x = jnp.pad(emb[input_step[0]], ((0, Bp - B), (0, 0)))              # (Bp, Hp) bf16
    h0 = jnp.pad(last_hidden[0], ((0, Bp - B), (0, Hp - H)))            # (Bp, Hp) f32

    grid_spec = pltpu.PrefetchScalarGridSpec(
        num_scalar_prefetch=0,
        grid=(n_v_tiles,),
        in_specs=[
            _spec((Bp, Hp), lambda j: (0, 0), buffers=1),               # x (resident)
            _spec((Bp, Hp), lambda j: (0, 0), buffers=1),               # h0 (resident)
            _spec((Bp, L, Hp), lambda j: (0, 0, 0), buffers=1),         # encoder outputs
            _spec((Hp, 3 * Hp), lambda j: (0, 0), buffers=1),           # w_ih
            _spec((Hp, 3 * Hp), lambda j: (0, 0), buffers=1),           # w_hh
            _spec((1, 3 * Hp), lambda j: (0, 0), buffers=1),            # b_ih
            _spec((1, 3 * Hp), lambda j: (0, 0), buffers=1),            # b_hh
            _spec((Hp, Hp), lambda j: (0, 0), buffers=1),               # w_concat (rnn half)
            _spec((Hp, Hp), lambda j: (0, 0), buffers=1),               # w_concat (ctx half)
            _spec((1, Hp), lambda j: (0, 0), buffers=1),                # b_concat
            _spec((Hp, v_tile), lambda j: (0, j), buffers=2),           # w_out tile (streamed)
            _spec((1, v_tile), lambda j: (0, j), buffers=2),            # b_out tile (streamed)
        ],
        out_specs=[
            pl.BlockSpec((n_v_tiles, Bp, v_tile), lambda j: (0, 0, 0)),  # logits/probs (resident)
            pl.BlockSpec((Bp, Hp), lambda j: (0, 0)),                    # new hidden (resident)
        ],
        scratch_shapes=[
            pltpu.VMEM((Bp, Hp), jnp.bfloat16),   # concat_output (persists across tiles)
        ],
    )

    cost = pl.CostEstimate(
        flops=2 * Bp * Hp * Vp + 4 * Bp * Hp * 3 * Hp + 4 * Bp * Hp * Hp + 4 * Bp * L * Hp,
        transcendentals=Bp * (Vp + 6 * Hp + 2 * L),
        bytes_accessed=2 * Hp * Vp + 4 * Bp * Vp + 2 * Bp * L * Hp
                       + 4 * Hp * 3 * Hp + 4 * Hp * Hp,
    )

    out3, h_p = pl.pallas_call(
        _decoder_kernel,
        out_shape=(
            jax.ShapeDtypeStruct((n_v_tiles, Bp, v_tile), jnp.float32),
            jax.ShapeDtypeStruct((Bp, Hp), jnp.float32),
        ),
        grid_spec=grid_spec,
        compiler_params=pltpu.CompilerParams(
            dimension_semantics=("arbitrary",),
            vmem_limit_bytes=_vmem_limit_bytes()),
        cost_estimate=cost,
    )(x, h0, enc_prepped,
      prepped["w_ih"], prepped["w_hh"], prepped["b_ih"], prepped["b_hh"],
      prepped["wc_h"], prepped["wc_c"], prepped["b_cat"],
      prepped["w_out"], prepped["b_out"])

    # (n_tiles, Bp, TV) -> (Bp, Vp); tiny relayout (~Bp*Vp*4 B) vs. the w_out stream.
    probs = jnp.transpose(out3, (1, 0, 2)).reshape(Bp, Vp)[:B, :V]      # (B, V) softmax
    hidden = h_p[:B, :H][None]                                          # (1, B, H)
    return probs, hidden


def _reference(input_step, last_hidden, encoder_outputs, params):
    """Pure-JAX f32 reference of the same forward pass (for correctness check)."""
    H = params["embedding"].shape[1]
    x = params["embedding"][input_step[0]]
    h = last_hidden[0]
    gi = x @ params["w_ih"].T + params["b_ih"]
    gh = h @ params["w_hh"].T + params["b_hh"]
    r = jax.nn.sigmoid(gi[:, :H] + gh[:, :H])
    z = jax.nn.sigmoid(gi[:, H:2 * H] + gh[:, H:2 * H])
    n = jnp.tanh(gi[:, 2 * H:] + r * gh[:, 2 * H:])
    h_new = (1.0 - z) * n + z * h
    scores = jnp.sum(h_new[None, :, :] * encoder_outputs, axis=2).T      # (B, L)
    attn = jax.nn.softmax(scores, axis=1)
    context = jnp.einsum("bl,lbh->bh", attn, encoder_outputs)
    cat = jnp.concatenate([h_new, context], axis=1)
    concat_out = jnp.tanh(cat @ params["w_concat"].T + params["b_concat"])
    logits = concat_out @ params["w_out"].T + params["b_out"]
    return jax.nn.softmax(logits, axis=1), h_new[None]


if __name__ == "__main__":
    B, H, L, V = 2, 32, 8, 64   # batch, hidden_size, encoder seq len, output (vocab) size

    key = jax.random.PRNGKey(0)
    ks = jax.random.split(key, 12)
    scale = 0.1
    params = {
        "embedding": scale * jax.random.normal(ks[0], (V, H), jnp.float32),
        "w_ih":      scale * jax.random.normal(ks[1], (3 * H, H), jnp.float32),
        "w_hh":      scale * jax.random.normal(ks[2], (3 * H, H), jnp.float32),
        "b_ih":      scale * jax.random.normal(ks[3], (3 * H,), jnp.float32),
        "b_hh":      scale * jax.random.normal(ks[4], (3 * H,), jnp.float32),
        "w_concat":  scale * jax.random.normal(ks[5], (H, 2 * H), jnp.float32),
        "b_concat":  scale * jax.random.normal(ks[6], (H,), jnp.float32),
        "w_out":     scale * jax.random.normal(ks[7], (V, H), jnp.float32),
        "b_out":     scale * jax.random.normal(ks[8], (V,), jnp.float32),
    }

    input_step = jax.random.randint(ks[9], (1, B), 0, V, jnp.int32)       # (1, B)
    last_hidden = scale * jax.random.normal(ks[10], (1, B, H), jnp.float32)
    encoder_outputs = scale * jax.random.normal(ks[11], (L, B, H), jnp.float32)

    prepped = prepare_params(params)                # once per model
    enc_p = prepare_encoder_outputs(encoder_outputs)  # once per sequence (hoisted relayout)

    out, hidden = luong_attn_decoder_step(input_step, last_hidden, enc_p, prepped)
    out = jax.block_until_ready(out)
    hidden = jax.block_until_ready(hidden)

    ref_out, ref_hidden = _reference(input_step, last_hidden, encoder_outputs, params)
    assert out.shape == (B, V) and hidden.shape == (1, B, H)
    # bf16 weights / activations on the MXU path, f32 gate math & accumulation.
    assert jnp.allclose(hidden, ref_hidden, atol=2e-3, rtol=2e-3)
    assert jnp.allclose(out, ref_out, atol=2e-3, rtol=2e-2)
    # exact in-kernel normalization -> rows sum to 1 up to f32 rounding.
    assert jnp.allclose(jnp.sum(out, axis=1), 1.0, atol=1e-3)

    print("KERNEL_OK")
</pallas_src>

<mosaic_0001>
module attributes {stable_mosaic.version = 11 : i64} {
  func.func @_decoder_kernel(%arg0: i32, %arg1: memref<8x128xbf16, #tpu.memory_space<vmem>>, %arg2: memref<8x128xf32, #tpu.memory_space<vmem>>, %arg3: memref<8x8x128xbf16, #tpu.memory_space<vmem>>, %arg4: memref<128x384xbf16, #tpu.memory_space<vmem>>, %arg5: memref<128x384xbf16, #tpu.memory_space<vmem>>, %arg6: memref<1x384xf32, #tpu.memory_space<vmem>>, %arg7: memref<1x384xf32, #tpu.memory_space<vmem>>, %arg8: memref<128x128xbf16, #tpu.memory_space<vmem>>, %arg9: memref<128x128xbf16, #tpu.memory_space<vmem>>, %arg10: memref<1x128xf32, #tpu.memory_space<vmem>>, %arg11: memref<128x128xbf16, #tpu.memory_space<vmem>>, %arg12: memref<1x128xf32, #tpu.memory_space<vmem>>, %arg13: memref<1x8x128xf32, #tpu.memory_space<vmem>>, %arg14: memref<8x128xf32, #tpu.memory_space<vmem>>, %arg15: memref<8x128xbf16, #tpu.memory_space<vmem>>) attributes {dimension_semantics = [#tpu.dimension_semantics<arbitrary>], iteration_bounds = array<i64: 1>, scalar_prefetch = 0 : i64, scratch_operands = 1 : i64, tpu.core_type = #tpu.core_type<tc>, window_params = [{pipeline_mode = #tpu.pipeline_mode<synchronous>, transform_indices = @transform_0, window_bounds = array<i64: 8, 128>}, {pipeline_mode = #tpu.pipeline_mode<synchronous>, transform_indices = @transform_1, window_bounds = array<i64: 8, 128>}, {pipeline_mode = #tpu.pipeline_mode<synchronous>, transform_indices = @transform_2, window_bounds = array<i64: 8, 8, 128>}, {pipeline_mode = #tpu.pipeline_mode<synchronous>, transform_indices = @transform_3, window_bounds = array<i64: 128, 384>}, {pipeline_mode = #tpu.pipeline_mode<synchronous>, transform_indices = @transform_4, window_bounds = array<i64: 128, 384>}, {pipeline_mode = #tpu.pipeline_mode<synchronous>, transform_indices = @transform_5, window_bounds = array<i64: 1, 384>}, {pipeline_mode = #tpu.pipeline_mode<synchronous>, transform_indices = @transform_6, window_bounds = array<i64: 1, 384>}, {pipeline_mode = #tpu.pipeline_mode<synchronous>, transform_indices = @transform_7, window_bounds = array<i64: 128, 128>}, {pipeline_mode = #tpu.pipeline_mode<synchronous>, transform_indices = @transform_8, window_bounds = array<i64: 128, 128>}, {pipeline_mode = #tpu.pipeline_mode<synchronous>, transform_indices = @transform_9, window_bounds = array<i64: 1, 128>}, {pipeline_mode = #tpu.pipeline_mode<double_buffered>, transform_indices = @transform_10, window_bounds = array<i64: 128, 128>}, {pipeline_mode = #tpu.pipeline_mode<double_buffered>, transform_indices = @transform_11, window_bounds = array<i64: 1, 128>}, {pipeline_mode = #tpu.pipeline_mode<synchronous>, transform_indices = @transform_12, window_bounds = array<i64: 1, 8, 128>}, {pipeline_mode = #tpu.pipeline_mode<synchronous>, transform_indices = @transform_13, window_bounds = array<i64: 8, 128>}]} {
    %c0_i32 = arith.constant 0 : i32
    %0 = arith.cmpi eq, %arg0, %c0_i32 : i32
    %1 = arith.extui %0 : i1 to i32
    %c0_i32_0 = arith.constant 0 : i32
    %2 = arith.cmpi ne, %1, %c0_i32_0 : i32
    scf.if %2 {
      %c0_10 = arith.constant 0 : index
      %c0_11 = arith.constant 0 : index
      %16 = vector.load %arg1[%c0_10, %c0_11] : memref<8x128xbf16, #tpu.memory_space<vmem>>, vector<8x128xbf16>
      %c0_12 = arith.constant 0 : index
      %c0_13 = arith.constant 0 : index
      %17 = vector.load %arg2[%c0_12, %c0_13] : memref<8x128xf32, #tpu.memory_space<vmem>>, vector<8x128xf32>
      %c0_14 = arith.constant 0 : index
      %c0_15 = arith.constant 0 : index
      %18 = vector.load %arg4[%c0_14, %c0_15] : memref<128x384xbf16, #tpu.memory_space<vmem>>, vector<128x384xbf16>
      %cst_16 = arith.constant dense<0.000000e+00> : vector<8x384xf32>
      %19 = tpu.matmul %16, %18, %cst_16 {dimension_numbers = #tpu.dot_dimension_numbers<[1], [0], [0], [1], [0, 0, 1, 1], [], []>} : vector<8x128xbf16>, vector<128x384xbf16>, vector<8x384xf32> -> vector<8x384xf32>
      %c0_17 = arith.constant 0 : index
      %c0_18 = arith.constant 0 : index
      %20 = vector.load %arg6[%c0_17, %c0_18] : memref<1x384xf32, #tpu.memory_space<vmem>>, vector<1x384xf32>
      %21 = vector.broadcast %20 : vector<1x384xf32> to vector<8x384xf32>
      %22 = arith.addf %19, %21 : vector<8x384xf32>
      %23 = arith.truncf %17 : vector<8x128xf32> to vector<8x128xbf16>
      %c0_19 = arith.constant 0 : index
      %c0_20 = arith.constant 0 : index
      %24 = vector.load %arg5[%c0_19, %c0_20] : memref<128x384xbf16, #tpu.memory_space<vmem>>, vector<128x384xbf16>
      %cst_21 = arith.constant dense<0.000000e+00> : vector<8x384xf32>
      %25 = tpu.matmul %23, %24, %cst_21 {dimension_numbers = #tpu.dot_dimension_numbers<[1], [0], [0], [1], [0, 0, 1, 1], [], []>} : vector<8x128xbf16>, vector<128x384xbf16>, vector<8x384xf32> -> vector<8x384xf32>
      %c0_22 = arith.constant 0 : index
      %c0_23 = arith.constant 0 : index
      %26 = vector.load %arg7[%c0_22, %c0_23] : memref<1x384xf32, #tpu.memory_space<vmem>>, vector<1x384xf32>
      %27 = vector.broadcast %26 : vector<1x384xf32> to vector<8x384xf32>
      %28 = arith.addf %25, %27 : vector<8x384xf32>
      %29 = vector.extract_strided_slice %22 {offsets = [0, 0], sizes = [8, 128], strides = [1, 1]} : vector<8x384xf32> to vector<8x128xf32>
      %30 = vector.extract_strided_slice %28 {offsets = [0, 0], sizes = [8, 128], strides = [1, 1]} : vector<8x384xf32> to vector<8x128xf32>
      %31 = arith.addf %29, %30 : vector<8x128xf32>
      %32 = arith.negf %31 : vector<8x128xf32>
      %33 = math.exp %32 : vector<8x128xf32>
      %cst_24 = arith.constant 1.000000e+00 : f32
      %34 = vector.broadcast %cst_24 : f32 to vector<8x128xf32>
      %35 = arith.addf %34, %33 : vector<8x128xf32>
      %36 = arith.divf %34, %35 : vector<8x128xf32>
      %37 = vector.extract_strided_slice %22 {offsets = [0, 128], sizes = [8, 128], strides = [1, 1]} : vector<8x384xf32> to vector<8x128xf32>
      %38 = vector.extract_strided_slice %28 {offsets = [0, 128], sizes = [8, 128], strides = [1, 1]} : vector<8x384xf32> to vector<8x128xf32>
      %39 = arith.addf %37, %38 : vector<8x128xf32>
      %40 = arith.negf %39 : vector<8x128xf32>
      %41 = math.exp %40 : vector<8x128xf32>
      %cst_25 = arith.constant 1.000000e+00 : f32
      %42 = vector.broadcast %cst_25 : f32 to vector<8x128xf32>
      %43 = arith.addf %42, %41 : vector<8x128xf32>
      %44 = arith.divf %42, %43 : vector<8x128xf32>
      %45 = vector.extract_strided_slice %22 {offsets = [0, 256], sizes = [8, 128], strides = [1, 1]} : vector<8x384xf32> to vector<8x128xf32>
      %46 = vector.extract_strided_slice %28 {offsets = [0, 256], sizes = [8, 128], strides = [1, 1]} : vector<8x384xf32> to vector<8x128xf32>
      %47 = arith.mulf %36, %46 : vector<8x128xf32>
      %48 = arith.addf %45, %47 : vector<8x128xf32>
      %49 = math.tanh %48 : vector<8x128xf32>
      %cst_26 = arith.constant 1.000000e+00 : f32
      %50 = vector.broadcast %cst_26 : f32 to vector<8x128xf32>
      %51 = arith.subf %50, %44 : vector<8x128xf32>
      %52 = arith.mulf %51, %49 : vector<8x128xf32>
      %53 = arith.mulf %44, %17 : vector<8x128xf32>
      %54 = arith.addf %52, %53 : vector<8x128xf32>
      %c0_27 = arith.constant 0 : index
      %c0_28 = arith.constant 0 : index
      %55 = vector.load %arg14[%c0_27, %c0_28] : memref<8x128xf32, #tpu.memory_space<vmem>>, vector<8x128xf32>
      tpu.vector_store %arg14[%c0_27, %c0_28], %54 {strides = array<i32>} : memref<8x128xf32, #tpu.memory_space<vmem>>, vector<8x128xf32>,
      %c0_29 = arith.constant 0 : index
      %c0_30 = arith.constant 0 : index
      %c0_31 = arith.constant 0 : index
      %56 = vector.load %arg3[%c0_29, %c0_30, %c0_31] : memref<8x8x128xbf16, #tpu.memory_space<vmem>>, vector<8x8x128xbf16>
      %57 = arith.truncf %54 : vector<8x128xf32> to vector<8x128xbf16>
      %58 = vector.shape_cast %57 : vector<8x128xbf16> to vector<8x1x128xbf16>
      "tpu.trace_start"() <{level = 10 : i32, message = "bqh,blh->bql"}> : () -> ()
      %cst_32 = arith.constant dense<0.000000e+00> : vector<8x1x8xf32>
      %59 = tpu.matmul %58, %56, %cst_32 {dimension_numbers = #tpu.dot_dimension_numbers<[2], [2], [1], [1], [0, 0, 0, 1, 1, 1], [0], [0]>} : vector<8x1x128xbf16>, vector<8x8x128xbf16>, vector<8x1x8xf32> -> vector<8x1x8xf32>
      "tpu.trace_stop"() : () -> ()
      %cst_33 = arith.constant dense<0xFF800000> : vector<8x1xf32>
      %60 = vector.multi_reduction <maximumf>, %59, %cst_33 [2] : vector<8x1x8xf32> to vector<8x1xf32>
      %61 = vector.shape_cast %60 : vector<8x1xf32> to vector<8x1x1xf32>
      %62 = vector.broadcast %61 : vector<8x1x1xf32> to vector<8x1x8xf32>
      %63 = arith.subf %59, %62 : vector<8x1x8xf32>
      %64 = math.exp %63 : vector<8x1x8xf32>
      %cst_34 = arith.constant dense<0.000000e+00> : vector<8x1xf32>
      %65 = vector.multi_reduction <add>, %64, %cst_34 [2] : vector<8x1x8xf32> to vector<8x1xf32>
      %66 = vector.shape_cast %65 : vector<8x1xf32> to vector<8x1x1xf32>
      %67 = vector.broadcast %66 : vector<8x1x1xf32> to vector<8x1x8xf32>
      %68 = arith.divf %64, %67 : vector<8x1x8xf32>
      %69 = arith.truncf %68 : vector<8x1x8xf32> to vector<8x1x8xbf16>
      "tpu.trace_start"() <{level = 10 : i32, message = "bql,blh->bqh"}> : () -> ()
      %cst_35 = arith.constant dense<0.000000e+00> : vector<8x1x128xf32>
      %70 = tpu.matmul %69, %56, %cst_35 {dimension_numbers = #tpu.dot_dimension_numbers<[2], [1], [1], [2], [0, 0, 0, 1, 1, 2], [0], [0]>} : vector<8x1x8xbf16>, vector<8x8x128xbf16>, vector<8x1x128xf32> -> vector<8x1x128xf32>
      "tpu.trace_stop"() : () -> ()
      %71 = vector.shape_cast %70 : vector<8x1x128xf32> to vector<8x128xf32>
      %c0_36 = arith.constant 0 : index
      %c0_37 = arith.constant 0 : index
      %72 = vector.load %arg8[%c0_36, %c0_37] : memref<128x128xbf16, #tpu.memory_space<vmem>>, vector<128x128xbf16>
      %cst_38 = arith.constant dense<0.000000e+00> : vector<8x128xf32>
      %73 = tpu.matmul %57, %72, %cst_38 {dimension_numbers = #tpu.dot_dimension_numbers<[1], [0], [0], [1], [0, 0, 1, 1], [], []>} : vector<8x128xbf16>, vector<128x128xbf16>, vector<8x128xf32> -> vector<8x128xf32>
      %74 = arith.truncf %71 : vector<8x128xf32> to vector<8x128xbf16>
      %c0_39 = arith.constant 0 : index
      %c0_40 = arith.constant 0 : index
      %75 = vector.load %arg9[%c0_39, %c0_40] : memref<128x128xbf16, #tpu.memory_space<vmem>>, vector<128x128xbf16>
      %cst_41 = arith.constant dense<0.000000e+00> : vector<8x128xf32>
      %76 = tpu.matmul %74, %75, %cst_41 {dimension_numbers = #tpu.dot_dimension_numbers<[1], [0], [0], [1], [0, 0, 1, 1], [], []>} : vector<8x128xbf16>, vector<128x128xbf16>, vector<8x128xf32> -> vector<8x128xf32>
      %77 = arith.addf %73, %76 : vector<8x128xf32>
      %c0_42 = arith.constant 0 : index
      %c0_43 = arith.constant 0 : index
      %78 = vector.load %arg10[%c0_42, %c0_43] : memref<1x128xf32, #tpu.memory_space<vmem>>, vector<1x128xf32>
      %79 = vector.broadcast %78 : vector<1x128xf32> to vector<8x128xf32>
      %80 = arith.addf %77, %79 : vector<8x128xf32>
      %81 = math.tanh %80 : vector<8x128xf32>
      %82 = arith.truncf %81 : vector<8x128xf32> to vector<8x128xbf16>
      %c0_44 = arith.constant 0 : index
      %c0_45 = arith.constant 0 : index
      %83 = vector.load %arg15[%c0_44, %c0_45] : memref<8x128xbf16, #tpu.memory_space<vmem>>, vector<8x128xbf16>
      tpu.vector_store %arg15[%c0_44, %c0_45], %82 {strides = array<i32>} : memref<8x128xbf16, #tpu.memory_space<vmem>>, vector<8x128xbf16>,
    } else {
    }
    %c0 = arith.constant 0 : index
    %c0_1 = arith.constant 0 : index
    %3 = vector.load %arg15[%c0, %c0_1] : memref<8x128xbf16, #tpu.memory_space<vmem>>, vector<8x128xbf16>
    %c0_2 = arith.constant 0 : index
    %c0_3 = arith.constant 0 : index
    %4 = vector.load %arg11[%c0_2, %c0_3] : memref<128x128xbf16, #tpu.memory_space<vmem>>, vector<128x128xbf16>
    %cst = arith.constant dense<0.000000e+00> : vector<8x128xf32>
    %5 = tpu.matmul %3, %4, %cst {dimension_numbers = #tpu.dot_dimension_numbers<[1], [0], [0], [1], [0, 0, 1, 1], [], []>} : vector<8x128xbf16>, vector<128x128xbf16>, vector<8x128xf32> -> vector<8x128xf32>
    %c0_4 = arith.constant 0 : index
    %c0_5 = arith.constant 0 : index
    %6 = vector.load %arg12[%c0_4, %c0_5] : memref<1x128xf32, #tpu.memory_space<vmem>>, vector<1x128xf32>
    %7 = vector.broadcast %6 : vector<1x128xf32> to vector<8x128xf32>
    %8 = arith.addf %5, %7 : vector<8x128xf32>
    %9 = arith.index_cast %arg0 : i32 to index
    %c0_6 = arith.constant 0 : index
    %c0_7 = arith.constant 0 : index
    %10 = vector.load %arg13[%9, %c0_6, %c0_7] : memref<1x8x128xf32, #tpu.memory_space<vmem>>, vector<1x8x128xf32>
    %11 = vector.shape_cast %10 : vector<1x8x128xf32> to vector<8x128xf32>
    %12 = vector.shape_cast %8 : vector<8x128xf32> to vector<1x8x128xf32>
    tpu.vector_store %arg13[%9, %c0_6, %c0_7], %12 {strides = array<i32>} : memref<1x8x128xf32, #tpu.memory_space<vmem>>, vector<1x8x128xf32>,
    %c0_i32_8 = arith.constant 0 : i32
    %13 = arith.cmpi eq, %arg0, %c0_i32_8 : i32
    %14 = arith.extui %13 : i1 to i32
    %c0_i32_9 = arith.constant 0 : i32
    %15 = arith.cmpi ne, %14, %c0_i32_9 : i32
    scf.if %15 {
      %c0_10 = arith.constant 0 : index
      %c0_11 = arith.constant 0 : index
      %c0_12 = arith.constant 0 : index
      %16 = vector.load %arg13[%c0_10, %c0_11, %c0_12] : memref<1x8x128xf32, #tpu.memory_space<vmem>>, vector<1x8x128xf32>
      %cst_13 = arith.constant dense<0xFF800000> : vector<1x8xf32>
      %17 = vector.multi_reduction <maximumf>, %16, %cst_13 [2] : vector<1x8x128xf32> to vector<1x8xf32>
      %18 = vector.shape_cast %17 : vector<1x8xf32> to vector<1x8x1xf32>
      %cst_14 = arith.constant dense<0xFF800000> : vector<8x1xf32>
      %19 = vector.multi_reduction <maximumf>, %18, %cst_14 [0] : vector<1x8x1xf32> to vector<8x1xf32>
      %20 = vector.shape_cast %19 : vector<8x1xf32> to vector<1x8x1xf32>
      %21 = vector.broadcast %20 : vector<1x8x1xf32> to vector<1x8x128xf32>
      %22 = arith.subf %16, %21 : vector<1x8x128xf32>
      %23 = math.exp %22 : vector<1x8x128xf32>
      %cst_15 = arith.constant dense<0.000000e+00> : vector<1x8xf32>
      %24 = vector.multi_reduction <add>, %23, %cst_15 [2] : vector<1x8x128xf32> to vector<1x8xf32>
      %25 = vector.shape_cast %24 : vector<1x8xf32> to vector<1x8x1xf32>
      %cst_16 = arith.constant dense<0.000000e+00> : vector<8x1xf32>
      %26 = vector.multi_reduction <add>, %25, %cst_16 [0] : vector<1x8x1xf32> to vector<8x1xf32>
      %27 = vector.shape_cast %26 : vector<8x1xf32> to vector<1x8x1xf32>
      %28 = vector.broadcast %27 : vector<1x8x1xf32> to vector<1x8x128xf32>
      %29 = arith.divf %23, %28 : vector<1x8x128xf32>
      %c0_17 = arith.constant 0 : index
      %c0_18 = arith.constant 0 : index
      %c0_19 = arith.constant 0 : index
      %30 = vector.load %arg13[%c0_17, %c0_18, %c0_19] : memref<1x8x128xf32, #tpu.memory_space<vmem>>, vector<1x8x128xf32>
      tpu.vector_store %arg13[%c0_17, %c0_18, %c0_19], %29 {strides = array<i32>} : memref<1x8x128xf32, #tpu.memory_space<vmem>>, vector<1x8x128xf32>,
    } else {
    }
    return
  }
  func.func @transform_0(%arg0: i32) -> (i32, i32) {
    %c0_i32 = arith.constant 0 : i32
    %c0_i32_0 = arith.constant 0 : i32
    %c0_i32_1 = arith.constant 0 : i32
    return %c0_i32, %c0_i32_0 : i32, i32
  }
  func.func @transform_1(%arg0: i32) -> (i32, i32) {
    %c0_i32 = arith.constant 0 : i32
    %c0_i32_0 = arith.constant 0 : i32
    %c0_i32_1 = arith.constant 0 : i32
    return %c0_i32, %c0_i32_0 : i32, i32
  }
  func.func @transform_2(%arg0: i32) -> (i32, i32, i32) {
    %c0_i32 = arith.constant 0 : i32
    %c0_i32_0 = arith.constant 0 : i32
    %c0_i32_1 = arith.constant 0 : i32
    %c0_i32_2 = arith.constant 0 : i32
    return %c0_i32, %c0_i32_0, %c0_i32_1 : i32, i32, i32
  }
  func.func @transform_3(%arg0: i32) -> (i32, i32) {
    %c0_i32 = arith.constant 0 : i32
    %c0_i32_0 = arith.constant 0 : i32
    %c0_i32_1 = arith.constant 0 : i32
    return %c0_i32, %c0_i32_0 : i32, i32
  }
  func.func @transform_4(%arg0: i32) -> (i32, i32) {
    %c0_i32 = arith.constant 0 : i32
    %c0_i32_0 = arith.constant 0 : i32
    %c0_i32_1 = arith.constant 0 : i32
    return %c0_i32, %c0_i32_0 : i32, i32
  }
  func.func @transform_5(%arg0: i32) -> (i32, i32) {
    %c0_i32 = arith.constant 0 : i32
    %c0_i32_0 = arith.constant 0 : i32
    %c0_i32_1 = arith.constant 0 : i32
    return %c0_i32, %c0_i32_0 : i32, i32
  }
  func.func @transform_6(%arg0: i32) -> (i32, i32) {
    %c0_i32 = arith.constant 0 : i32
    %c0_i32_0 = arith.constant 0 : i32
    %c0_i32_1 = arith.constant 0 : i32
    return %c0_i32, %c0_i32_0 : i32, i32
  }
  func.func @transform_7(%arg0: i32) -> (i32, i32) {
    %c0_i32 = arith.constant 0 : i32
    %c0_i32_0 = arith.constant 0 : i32
    %c0_i32_1 = arith.constant 0 : i32
    return %c0_i32, %c0_i32_0 : i32, i32
  }
  func.func @transform_8(%arg0: i32) -> (i32, i32) {
    %c0_i32 = arith.constant 0 : i32
    %c0_i32_0 = arith.constant 0 : i32
    %c0_i32_1 = arith.constant 0 : i32
    return %c0_i32, %c0_i32_0 : i32, i32
  }
  func.func @transform_9(%arg0: i32) -> (i32, i32) {
    %c0_i32 = arith.constant 0 : i32
    %c0_i32_0 = arith.constant 0 : i32
    %c0_i32_1 = arith.constant 0 : i32
    return %c0_i32, %c0_i32_0 : i32, i32
  }
  func.func @transform_10(%arg0: i32) -> (i32, i32) {
    %c0_i32 = arith.constant 0 : i32
    %c0_i32_0 = arith.constant 0 : i32
    return %c0_i32, %arg0 : i32, i32
  }
  func.func @transform_11(%arg0: i32) -> (i32, i32) {
    %c0_i32 = arith.constant 0 : i32
    %c0_i32_0 = arith.constant 0 : i32
    return %c0_i32, %arg0 : i32, i32
  }
  func.func @transform_12(%arg0: i32) -> (i32, i32, i32) {
    %c0_i32 = arith.constant 0 : i32
    %c0_i32_0 = arith.constant 0 : i32
    %c0_i32_1 = arith.constant 0 : i32
    %c0_i32_2 = arith.constant 0 : i32
    return %c0_i32, %c0_i32_0, %c0_i32_1 : i32, i32, i32
  }
  func.func @transform_13(%arg0: i32) -> (i32, i32) {
    %c0_i32 = arith.constant 0 : i32
    %c0_i32_0 = arith.constant 0 : i32
    %c0_i32_1 = arith.constant 0 : i32
    return %c0_i32, %c0_i32_0 : i32, i32
  }
}

</mosaic_0001>

<llo_original>
// kernel: luong_attn_decoder_step.1
$region0: #{luong_attn_decoder_step.1}
  #allocation0 [shape = 'u32[]', space=smem, size = 0x4, offset = 0x4, fixed_abs, tag = 'smem constant byte address 0x4 - core index']
  #allocation1 [shape = 'u32[72,128]{1,0:T(1,128)}', space=vmem, size = 0x9000, scoped, tag = 'internal scratch']
  #allocation2 [shape = 'bf16[8,128]{1,0:T(8,128)(2,1)}', space=vmem, size = 0x800, scoped, tag = 'scratch operand']
  %s0 = inlined_call_operand.vmem [shape: bf16[8,128], index: 0, kind: input, shape index: {}]
  %s1 = inlined_call_operand.vmem [shape: f32[8,128], index: 1, kind: input, shape index: {}]
  %s2 = inlined_call_operand.vmem [shape: bf16[8,8,128], index: 2, kind: input, shape index: {}]
  %s3 = inlined_call_operand.hbm [shape: bf16[128,384], index: 3, kind: input, shape index: {}]
  %s4 = inlined_call_operand.hbm [shape: bf16[128,384], index: 4, kind: input, shape index: {}]
  %s5 = inlined_call_operand.vmem [shape: f32[1,384], index: 5, kind: input, shape index: {}]
  %s6 = inlined_call_operand.vmem [shape: f32[1,384], index: 6, kind: input, shape index: {}]
  %s7 = inlined_call_operand.hbm [shape: bf16[128,128], index: 7, kind: input, shape index: {}]
  %s8 = inlined_call_operand.hbm [shape: bf16[128,128], index: 8, kind: input, shape index: {}]
  %s9 = inlined_call_operand.vmem [shape: f32[1,128], index: 9, kind: input, shape index: {}]
  %s10 = inlined_call_operand.hbm [shape: bf16[128,128], index: 10, kind: input, shape index: {}]
  %s11 = inlined_call_operand.vmem [shape: f32[1,128], index: 11, kind: input, shape index: {}]
  %s12 = inlined_call_operand.vmem [shape: f32[1,8,128], index: 12, kind: output, shape index: {0}]
  %s13 = inlined_call_operand.vmem [shape: f32[8,128], index: 13, kind: output, shape index: {1}]
  %14 = xla_tuple %s12, %s13
  %s15 = sld [smem:[#allocation0]]
  $region94: #{luong_attn_decoder_step.1} parent=0
    _
  %s17 = ssub.s32 1, %s15
  %s18 = scalar_select 0, %s17, %s15
  $region1: #{luong_attn_decoder_step.1} parent=0
    #allocation3 [shape = 'u8[98304]{0}', space=vmem, size = 0x18000, scoped, tag = 'input window, operand 3, single buffered']
    #allocation4 [shape = 's32[1]{0}', space=sflag, size = 0x4, scoped, tag = 'scoped memory for luong_attn_decoder_step.1']
    #allocation5 [shape = 'u8[98304]{0}', space=vmem, size = 0x18000, scoped, tag = 'input window, operand 4, single buffered']
    #allocation6 [shape = 's32[1]{0}', space=sflag, size = 0x4, scoped, tag = 'scoped memory for luong_attn_decoder_step.1']
    #allocation7 [shape = 'u8[32768]{0}', space=vmem, size = 0x8000, scoped, tag = 'input window, operand 7, single buffered']
    #allocation8 [shape = 'u8[32768]{0}', space=vmem, size = 0x8000, scoped, tag = 'input window, operand 8, single buffered']
    #allocation9 [shape = 's32[1]{0}', space=sflag, size = 0x4, scoped, tag = 'scoped memory for luong_attn_decoder_step.1']
    #allocation10 [shape = 'u8[32768]{0}', space=vmem, size = 0x8000, scoped, tag = 'input window, operand 10, single buffered']
    %19 = vsyncpa [#allocation4], 0
    %20 = vsyncpa [#allocation6], 0
    %21 = vsyncpa [#allocation9], 0
    // Predicated region
    $region2: #{luong_attn_decoder_step.1} parent=1 // pred_check
      _
    $region3: #{luong_attn_decoder_step.1} parent=1 // pred_check_branch
      %23 = sbr.rel (0) target = $region5
    $region4: #{luong_attn_decoder_step.1} parent=1 // pred_region
      _
    $region5: #{luong_attn_decoder_step.1} parent=1 // pred_fallthru
      _
    // Predicated region
    $region6: #{luong_attn_decoder_step.1} parent=1 // pred_check
      _
    $region7: #{luong_attn_decoder_step.1} parent=1 // pred_check_branch
      %25 = sbr.rel (0) target = $region9
    $region8: #{luong_attn_decoder_step.1} parent=1 // pred_region
      _
    $region9: #{luong_attn_decoder_step.1} parent=1 // pred_fallthru
      _
    // Predicated region
    $region10: #{luong_attn_decoder_step.1} parent=1 // pred_check
      _
    $region11: #{luong_attn_decoder_step.1} parent=1 // pred_check_branch
      %27 = sbr.rel (0) target = $region13
    $region12: #{luong_attn_decoder_step.1} parent=1 // pred_region
      _
    $region13: #{luong_attn_decoder_step.1} parent=1 // pred_fallthru
      _
    // Predicated region
    $region14: #{luong_attn_decoder_step.1} parent=1 // pred_check
      _
    $region15: #{luong_attn_decoder_step.1} parent=1 // pred_check_branch
      %29 = sbr.rel (0) target = $region17
    $region16: #{luong_attn_decoder_step.1} parent=1 // pred_region
      %31 = vsyncadd [#allocation4], 0
      %s32 = sshll.u32 %s3, 4
      %s33 = int_to_ptr.hbm [resolvable:$true] %s32
      %s34 = sshll.u32 [#allocation3], 4
      %s35 = int_to_ptr.vmem [resolvable:$true] %s34
      %40 = dma.hbm_to_vmem [thread:$0]  %s33, 3072, %s35, [#allocation4], 192, 192, 12
    $region17: #{luong_attn_decoder_step.1} parent=1 // pred_fallthru
      _
    // Predicated region
    $region18: #{luong_attn_decoder_step.1} parent=1 // pred_check
      _
    $region19: #{luong_attn_decoder_step.1} parent=1 // pred_check_branch
      %42 = sbr.rel (0) target = $region21
    $region20: #{luong_attn_decoder_step.1} parent=1 // pred_region
      %44 = vsyncadd [#allocation6], 0
      %s45 = sshll.u32 %s4, 4
      %s46 = int_to_ptr.hbm [resolvable:$true] %s45
      %s47 = sshll.u32 [#allocation5], 4
      %s48 = int_to_ptr.vmem [resolvable:$true] %s47
      %53 = dma.hbm_to_vmem [thread:$0]  %s46, 3072, %s48, [#allocation6], 192, 192, 12
    $region21: #{luong_attn_decoder_step.1} parent=1 // pred_fallthru
      _
    // Predicated region
    $region22: #{luong_attn_decoder_step.1} parent=1 // pred_check
      _
    $region23: #{luong_attn_decoder_step.1} parent=1 // pred_check_branch
      %55 = sbr.rel (0) target = $region25
    $region24: #{luong_attn_decoder_step.1} parent=1 // pred_region
      _
    $region25: #{luong_attn_decoder_step.1} parent=1 // pred_fallthru
      _
    // Predicated region
    $region26: #{luong_attn_decoder_step.1} parent=1 // pred_check
      _
    $region27: #{luong_attn_decoder_step.1} parent=1 // pred_check_branch
      %57 = sbr.rel (0) target = $region29
    $region28: #{luong_attn_decoder_step.1} parent=1 // pred_region
      _
    $region29: #{luong_attn_decoder_step.1} parent=1 // pred_fallthru
      _
    // Predicated region
    $region30: #{luong_attn_decoder_step.1} parent=1 // pred_check
      _
    $region31: #{luong_attn_decoder_step.1} parent=1 // pred_check_branch
      %59 = sbr.rel (0) target = $region33
    $region32: #{luong_attn_decoder_step.1} parent=1 // pred_region
      %61 = vsyncadd [#allocation6], 0
      %s62 = sshll.u32 %s7, 4
      %s63 = int_to_ptr.hbm [resolvable:$true] %s62
      %s64 = sshll.u32 [#allocation7], 4
      %s65 = int_to_ptr.vmem [resolvable:$true] %s64
      %70 = dma.hbm_to_vmem [thread:$0]  %s63, 1024, %s65, [#allocation6], 64, 64, 4
    $region33: #{luong_attn_decoder_step.1} parent=1 // pred_fallthru
      _
    // Predicated region
    $region34: #{luong_attn_decoder_step.1} parent=1 // pred_check
      _
    $region35: #{luong_attn_decoder_step.1} parent=1 // pred_check_branch
      %72 = sbr.rel (0) target = $region37
    $region36: #{luong_attn_decoder_step.1} parent=1 // pred_region
      %74 = vsyncadd [#allocation9], 0
      %s75 = sshll.u32 %s8, 4
      %s76 = int_to_ptr.hbm [resolvable:$true] %s75
      %s77 = sshll.u32 [#allocation8], 4
      %s78 = int_to_ptr.vmem [resolvable:$true] %s77
      %83 = dma.hbm_to_vmem [thread:$0]  %s76, 1024, %s78, [#allocation9], 64, 64, 4
    $region37: #{luong_attn_decoder_step.1} parent=1 // pred_fallthru
      _
    // Predicated region
    $region38: #{luong_attn_decoder_step.1} parent=1 // pred_check
      _
    $region39: #{luong_attn_decoder_step.1} parent=1 // pred_check_branch
      %85 = sbr.rel (0) target = $region41
    $region40: #{luong_attn_decoder_step.1} parent=1 // pred_region
      _
    $region41: #{luong_attn_decoder_step.1} parent=1 // pred_fallthru
      _
    // Predicated region
    $region42: #{luong_attn_decoder_step.1} parent=1 // pred_check
      _
    $region43: #{luong_attn_decoder_step.1} parent=1 // pred_check_branch
      %87 = sbr.rel (0) target = $region45
    $region44: #{luong_attn_decoder_step.1} parent=1 // pred_region
      %89 = vsyncadd [#allocation9], 0
      %s90 = sshll.u32 %s10, 4
      %s91 = int_to_ptr.hbm [resolvable:$true] %s90
      %s92 = sshll.u32 [#allocation10], 4
      %s93 = int_to_ptr.vmem [resolvable:$true] %s92
      %98 = dma.hbm_to_vmem [thread:$0]  %s91, 1024, %s93, [#allocation9], 64, 64, 4
    $region45: #{luong_attn_decoder_step.1} parent=1 // pred_fallthru
      _
    // Predicated region
    $region46: #{luong_attn_decoder_step.1} parent=1 // pred_check
      _
    $region47: #{luong_attn_decoder_step.1} parent=1 // pred_check_branch
      %100 = sbr.rel (0) target = $region49
    $region48: #{luong_attn_decoder_step.1} parent=1 // pred_region
      _
    $region49: #{luong_attn_decoder_step.1} parent=1 // pred_fallthru
      _
    // Predicated region
    $region50: #{luong_attn_decoder_step.1} parent=1 // pred_check
      _
    $region51: #{luong_attn_decoder_step.1} parent=1 // pred_check_branch
      %102 = sbr.rel (0) target = $region53
    $region52: #{luong_attn_decoder_step.1} parent=1 // pred_region
      %104 = dma.done [#allocation4], 3072
    $region53: #{luong_attn_decoder_step.1} parent=1 // pred_fallthru
      _
    // Predicated region
    $region54: #{luong_attn_decoder_step.1} parent=1 // pred_check
      _
    $region55: #{luong_attn_decoder_step.1} parent=1 // pred_check_branch
      %106 = sbr.rel (0) target = $region57
    $region56: #{luong_attn_decoder_step.1} parent=1 // pred_region
      %108 = dma.done [#allocation6], 3072
    $region57: #{luong_attn_decoder_step.1} parent=1 // pred_fallthru
      _
    // Predicated region
    $region58: #{luong_attn_decoder_step.1} parent=1 // pred_check
      _
    $region59: #{luong_attn_decoder_step.1} parent=1 // pred_check_branch
      %110 = sbr.rel (0) target = $region61
    $region60: #{luong_attn_decoder_step.1} parent=1 // pred_region
      %112 = dma.done [#allocation6], 1024
    $region61: #{luong_attn_decoder_step.1} parent=1 // pred_fallthru
      _
    // Predicated region
    $region62: #{luong_attn_decoder_step.1} parent=1 // pred_check
      _
    $region63: #{luong_attn_decoder_step.1} parent=1 // pred_check_branch
      %114 = sbr.rel (0) target = $region65
    $region64: #{luong_attn_decoder_step.1} parent=1 // pred_region
      %116 = dma.done [#allocation9], 1024
    $region65: #{luong_attn_decoder_step.1} parent=1 // pred_fallthru
      _
    // Predicated region
    $region66: #{luong_attn_decoder_step.1} parent=1 // pred_check
      _
    $region67: #{luong_attn_decoder_step.1} parent=1 // pred_check_branch
      %118 = sbr.rel (0) target = $region69
    $region68: #{luong_attn_decoder_step.1} parent=1 // pred_region
      %120 = dma.done [#allocation9], 1024
    $region69: #{luong_attn_decoder_step.1} parent=1 // pred_fallthru
      _
    %p122 = scmp.eq.s32.totalorder 0, 0
    // Predicated region
    $region70: #{luong_attn_decoder_step.1} parent=1 // pred_check
      %p123 = pneg %p122
    $region71: #{luong_attn_decoder_step.1} parent=1 // pred_check_branch
      %125 = sbr.rel (%p123) target = $region73
    $region72: #{luong_attn_decoder_step.1} parent=1 // pred_region
      %v126 = vld [vmem:[%s0] sm:$0xf]
      %v127 = vld [vmem:[%s1] sm:$0xff]
      %v128 = vld [vmem:[#allocation3] sm:$0xff]
      %v129 = vld [vmem:[#allocation3 + $0x8] sm:$0xf]
      %v130 = vld [vmem:[#allocation3 + $0xc] sm:$0xff]
      %v131 = vld [vmem:[#allocation3 + $0x14] sm:$0xf]
      %v132 = vld [vmem:[#allocation3 + $0x18] sm:$0xff]
      %v133 = vld [vmem:[#allocation3 + $0x20] sm:$0xf]
      %v134 = vld [vmem:[#allocation3 + $0x24] sm:$0xff]
      %v135 = vld [vmem:[#allocation3 + $0x2c] sm:$0xf]
      %v136 = vld [vmem:[#allocation3 + $0x30] sm:$0xff]
      %v137 = vld [vmem:[#allocation3 + $0x38] sm:$0xf]
      %v138 = vld [vmem:[#allocation3 + $0x3c] sm:$0xff]
      %v139 = vld [vmem:[#allocation3 + $0x44] sm:$0xf]
      %v140 = vld [vmem:[#allocation3 + $0x48] sm:$0xff]
      %v141 = vld [vmem:[#allocation3 + $0x50] sm:$0xf]
      %v142 = vld [vmem:[#allocation3 + $0x54] sm:$0xff]
      %v143 = vld [vmem:[#allocation3 + $0x5c] sm:$0xf]
      %v144 = vld [vmem:[#allocation3 + $0x60] sm:$0xff]
      %v145 = vld [vmem:[#allocation3 + $0x68] sm:$0xf]
      %v146 = vld [vmem:[#allocation3 + $0x6c] sm:$0xff]
      %v147 = vld [vmem:[#allocation3 + $0x74] sm:$0xf]
      %v148 = vld [vmem:[#allocation3 + $0x78] sm:$0xff]
      %v149 = vld [vmem:[#allocation3 + $0x80] sm:$0xf]
      %v150 = vld [vmem:[#allocation3 + $0x84] sm:$0xff]
      %v151 = vld [vmem:[#allocation3 + $0x8c] sm:$0xf]
      %v152 = vld [vmem:[#allocation3 + $0x90] sm:$0xff]
      %v153 = vld [vmem:[#allocation3 + $0x98] sm:$0xf]
      %v154 = vld [vmem:[#allocation3 + $0x9c] sm:$0xff]
      %v155 = vld [vmem:[#allocation3 + $0xa4] sm:$0xf]
      %v156 = vld [vmem:[#allocation3 + $0xa8] sm:$0xff]
      %v157 = vld [vmem:[#allocation3 + $0xb0] sm:$0xf]
      %v158 = vld [vmem:[#allocation3 + $0xb4] sm:$0xff]
      %v159 = vld [vmem:[#allocation3 + $0xbc] sm:$0xf]
      %v160 = vld [vmem:[%s5] sm:$0x7]
      %v162 = vperm.slane %v160, 0
      %v163 = vperm.slane %v160, 1
      %v164 = vperm.slane %v160, 2
      %v200 = vunpack.c.l.b16 %v128
      %v201 = vunpack.c.h.b16 %v128
      %v202 = vunpack.c.l.b16 %v129
      %v203 = vunpack.c.l.b16 %v130
      %v204 = vunpack.c.h.b16 %v130
      %v205 = vunpack.c.l.b16 %v131
      %v206 = vunpack.c.l.b16 %v132
      %v207 = vunpack.c.h.b16 %v132
      %v208 = vunpack.c.l.b16 %v133
      %v209 = vunpack.c.l.b16 %v134
      %v210 = vunpack.c.h.b16 %v134
      %v211 = vunpack.c.l.b16 %v135
      %v212 = vunpack.c.l.b16 %v136
      %v213 = vunpack.c.h.b16 %v136
      %v214 = vunpack.c.l.b16 %v137
      %v215 = vunpack.c.l.b16 %v138
      %v216 = vunpack.c.h.b16 %v138
      %v217 = vunpack.c.l.b16 %v139
      %v218 = vunpack.c.l.b16 %v140
      %v219 = vunpack.c.h.b16 %v140
      %v220 = vunpack.c.l.b16 %v141
      %v221 = vunpack.c.l.b16 %v142
      %v222 = vunpack.c.h.b16 %v142
      %v223 = vunpack.c.l.b16 %v143
      %v224 = vunpack.c.l.b16 %v144
      %v225 = vunpack.c.h.b16 %v144
      %v226 = vunpack.c.l.b16 %v145
      %v227 = vunpack.c.l.b16 %v146
      %v228 = vunpack.c.h.b16 %v146
      %v229 = vunpack.c.l.b16 %v147
      %v230 = vunpack.c.l.b16 %v148
      %v231 = vunpack.c.h.b16 %v148
      %v232 = vunpack.c.l.b16 %v149
      %v233 = vunpack.c.l.b16 %v150
      %v234 = vunpack.c.h.b16 %v150
      %v235 = vunpack.c.l.b16 %v151
      %v236 = vunpack.c.l.b16 %v152
      %v237 = vunpack.c.h.b16 %v152
      %v238 = vunpack.c.l.b16 %v153
      %v239 = vunpack.c.l.b16 %v154
      %v240 = vunpack.c.h.b16 %v154
      %v241 = vunpack.c.l.b16 %v155
      %v242 = vunpack.c.l.b16 %v156
      %v243 = vunpack.c.h.b16 %v156
      %v244 = vunpack.c.l.b16 %v157
      %v245 = vunpack.c.l.b16 %v158
      %v246 = vunpack.c.h.b16 %v158
      %v247 = vunpack.c.l.b16 %v159
      %v248 = vpack.c.b16 %v203, %v200
      %v249 = vpack.c.b16 %v204, %v201
      %v250 = vpack.c.b16 %v205, %v202
      %v251 = vpack.c.b16 %v209, %v206
      %v252 = vpack.c.b16 %v210, %v207
      %v253 = vpack.c.b16 %v211, %v208
      %v254 = vpack.c.b16 %v215, %v212
      %v255 = vpack.c.b16 %v216, %v213
      %v256 = vpack.c.b16 %v217, %v214
      %v257 = vpack.c.b16 %v221, %v218
      %v258 = vpack.c.b16 %v222, %v219
      %v259 = vpack.c.b16 %v223, %v220
      %v260 = vpack.c.b16 %v227, %v224
      %v261 = vpack.c.b16 %v228, %v225
      %v262 = vpack.c.b16 %v229, %v226
      %v263 = vpack.c.b16 %v233, %v230
      %v264 = vpack.c.b16 %v234, %v231
      %v265 = vpack.c.b16 %v235, %v232
      %v266 = vpack.c.b16 %v239, %v236
      %v267 = vpack.c.b16 %v240, %v237
      %v268 = vpack.c.b16 %v241, %v238
      %v269 = vpack.c.b16 %v245, %v242
      %v270 = vpack.c.b16 %v246, %v243
      %v271 = vpack.c.b16 %v247, %v244
      %296 = vmatpush.bf16.msra.mxu0 %v269
      %297 = vmatpush.bf16.msra.mxu0 %v266
      %298 = vmatpush.bf16.msra.mxu0 %v263
      %299 = vmatpush.bf16.msra.mxu0 %v260
      %300 = vmatpush.bf16.msra.mxu0 %v257
      %301 = vmatpush.bf16.msra.mxu0 %v254
      %302 = vmatpush.bf16.msra.mxu0 %v251
      %303 = vmatpush.bf16.msra.mxu0 %v248
      %304 = vmatmul.bf16.gmra.mxu0 %v126
      %v305 = vpop.f32.mrf.mxu0
      %v306 = vadd.f32 %v162, %v305
      %v307 = vpop.f32.mrf.mxu0
      %308 = vdwg.mxu0
      %309 = vmatpush.bf16.msra.mxu0 %v270
      %310 = vmatpush.bf16.msra.mxu0 %v267
      %311 = vmatpush.bf16.msra.mxu0 %v264
      %312 = vmatpush.bf16.msra.mxu0 %v261
      %313 = vmatpush.bf16.msra.mxu0 %v258
      %314 = vmatpush.bf16.msra.mxu0 %v255
      %315 = vmatpush.bf16.msra.mxu0 %v252
      %316 = vmatpush.bf16.msra.mxu0 %v249
      %317 = vmatmul.bf16.gmra.mxu0 %v126
      %v318 = vpop.f32.mrf.mxu0
      %v319 = vadd.f32 %v163, %v318
      %v320 = vpop.f32.mrf.mxu0
      %321 = vdwg.mxu0
      %322 = vmatpush.bf16.msra.mxu0 %v271
      %323 = vmatpush.bf16.msra.mxu0 %v268
      %324 = vmatpush.bf16.msra.mxu0 %v265
      %325 = vmatpush.bf16.msra.mxu0 %v262
      %326 = vmatpush.bf16.msra.mxu0 %v259
      %327 = vmatpush.bf16.msra.mxu0 %v256
      %328 = vmatpush.bf16.msra.mxu0 %v253
      %329 = vmatpush.bf16.msra.mxu0 %v250
      %330 = vmatmul.bf16.gmra.mxu0 %v126
      %v331 = vpop.f32.mrf.mxu0
      %v332 = vadd.f32 %v164, %v331
      %v333 = vpop.f32.mrf.mxu0
      %334 = vdwg.mxu0
      %v335 = vpack.c.bf16 %v127, %v127
      %v336 = vld [vmem:[#allocation5] sm:$0xff]
      %v337 = vld [vmem:[#allocation5 + $0x8] sm:$0xf]
      %v338 = vld [vmem:[#allocation5 + $0xc] sm:$0xff]
      %v339 = vld [vmem:[#allocation5 + $0x14] sm:$0xf]
      %v340 = vld [vmem:[#allocation5 + $0x18] sm:$0xff]
      %v341 = vld [vmem:[#allocation5 + $0x20] sm:$0xf]
      %v342 = vld [vmem:[#allocation5 + $0x24] sm:$0xff]
      %v343 = vld [vmem:[#allocation5 + $0x2c] sm:$0xf]
      %v344 = vld [vmem:[#allocation5 + $0x30] sm:$0xff]
      %v345 = vld [vmem:[#allocation5 + $0x38] sm:$0xf]
      %v346 = vld [vmem:[#allocation5 + $0x3c] sm:$0xff]
      %v347 = vld [vmem:[#allocation5 + $0x44] sm:$0xf]
      %v348 = vld [vmem:[#allocation5 + $0x48] sm:$0xff]
      %v349 = vld [vmem:[#allocation5 + $0x50] sm:$0xf]
      %v350 = vld [vmem:[#allocation5 + $0x54] sm:$0xff]
      %v351 = vld [vmem:[#allocation5 + $0x5c] sm:$0xf]
      %v352 = vld [vmem:[#allocation5 + $0x60] sm:$0xff]
      %v353 = vld [vmem:[#allocation5 + $0x68] sm:$0xf]
      %v354 = vld [vmem:[#allocation5 + $0x6c] sm:$0xff]
      %v355 = vld [vmem:[#allocation5 + $0x74] sm:$0xf]
      %v356 = vld [vmem:[#allocation5 + $0x78] sm:$0xff]
      %v357 = vld [vmem:[#allocation5 + $0x80] sm:$0xf]
      %v358 = vld [vmem:[#allocation5 + $0x84] sm:$0xff]
      %v359 = vld [vmem:[#allocation5 + $0x8c] sm:$0xf]
      %v360 = vld [vmem:[#allocation5 + $0x90] sm:$0xff]
      %v361 = vld [vmem:[#allocation5 + $0x98] sm:$0xf]
      %v362 = vld [vmem:[#allocation5 + $0x9c] sm:$0xff]
      %v363 = vld [vmem:[#allocation5 + $0xa4] sm:$0xf]
      %v364 = vld [vmem:[#allocation5 + $0xa8] sm:$0xff]
      %v365 = vld [vmem:[#allocation5 + $0xb0] sm:$0xf]
      %v366 = vld [vmem:[#allocation5 + $0xb4] sm:$0xff]
      %v367 = vld [vmem:[#allocation5 + $0xbc] sm:$0xf]
      %v368 = vld [vmem:[%s6] sm:$0x7]
      %v370 = vperm.slane %v368, 0
      %v371 = vperm.slane %v368, 1
      %v372 = vperm.slane %v368, 2
      %v408 = vunpack.c.l.b16 %v336
      %v409 = vunpack.c.h.b16 %v336
      %v410 = vunpack.c.l.b16 %v337
      %v411 = vunpack.c.l.b16 %v338
      %v412 = vunpack.c.h.b16 %v338
      %v413 = vunpack.c.l.b16 %v339
      %v414 = vunpack.c.l.b16 %v340
      %v415 = vunpack.c.h.b16 %v340
      %v416 = vunpack.c.l.b16 %v341
      %v417 = vunpack.c.l.b16 %v342
      %v418 = vunpack.c.h.b16 %v342
      %v419 = vunpack.c.l.b16 %v343
      %v420 = vunpack.c.l.b16 %v344
      %v421 = vunpack.c.h.b16 %v344
      %v422 = vunpack.c.l.b16 %v345
      %v423 = vunpack.c.l.b16 %v346
      %v424 = vunpack.c.h.b16 %v346
      %v425 = vunpack.c.l.b16 %v347
      %v426 = vunpack.c.l.b16 %v348
      %v427 = vunpack.c.h.b16 %v348
      %v428 = vunpack.c.l.b16 %v349
      %v429 = vunpack.c.l.b16 %v350
      %v430 = vunpack.c.h.b16 %v350
      %v431 = vunpack.c.l.b16 %v351
      %v432 = vunpack.c.l.b16 %v352
      %v433 = vunpack.c.h.b16 %v352
      %v434 = vunpack.c.l.b16 %v353
      %v435 = vunpack.c.l.b16 %v354
      %v436 = vunpack.c.h.b16 %v354
      %v437 = vunpack.c.l.b16 %v355
      %v438 = vunpack.c.l.b16 %v356
      %v439 = vunpack.c.h.b16 %v356
      %v440 = vunpack.c.l.b16 %v357
      %v441 = vunpack.c.l.b16 %v358
      %v442 = vunpack.c.h.b16 %v358
      %v443 = vunpack.c.l.b16 %v359
      %v444 = vunpack.c.l.b16 %v360
      %v445 = vunpack.c.h.b16 %v360
      %v446 = vunpack.c.l.b16 %v361
      %v447 = vunpack.c.l.b16 %v362
      %v448 = vunpack.c.h.b16 %v362
      %v449 = vunpack.c.l.b16 %v363
      %v450 = vunpack.c.l.b16 %v364
      %v451 = vunpack.c.h.b16 %v364
      %v452 = vunpack.c.l.b16 %v365
      %v453 = vunpack.c.l.b16 %v366
      %v454 = vunpack.c.h.b16 %v366
      %v455 = vunpack.c.l.b16 %v367
      %v456 = vpack.c.b16 %v411, %v408
      %v457 = vpack.c.b16 %v412, %v409
      %v458 = vpack.c.b16 %v413, %v410
      %v459 = vpack.c.b16 %v417, %v414
      %v460 = vpack.c.b16 %v418, %v415
      %v461 = vpack.c.b16 %v419, %v416
      %v462 = vpack.c.b16 %v423, %v420
      %v463 = vpack.c.b16 %v424, %v421
      %v464 = vpack.c.b16 %v425, %v422
      %v465 = vpack.c.b16 %v429, %v426
      %v466 = vpack.c.b16 %v430, %v427
      %v467 = vpack.c.b16 %v431, %v428
      %v468 = vpack.c.b16 %v435, %v432
      %v469 = vpack.c.b16 %v436, %v433
      %v470 = vpack.c.b16 %v437, %v434
      %v471 = vpack.c.b16 %v441, %v438
      %v472 = vpack.c.b16 %v442, %v439
      %v473 = vpack.c.b16 %v443, %v440
      %v474 = vpack.c.b16 %v447, %v444
      %v475 = vpack.c.b16 %v448, %v445
      %v476 = vpack.c.b16 %v449, %v446
      %v477 = vpack.c.b16 %v453, %v450
      %v478 = vpack.c.b16 %v454, %v451
      %v479 = vpack.c.b16 %v455, %v452
      %504 = vmatpush.bf16.msra.mxu0 %v477
      %505 = vmatpush.bf16.msra.mxu0 %v474
      %506 = vmatpush.bf16.msra.mxu0 %v471
      %507 = vmatpush.bf16.msra.mxu0 %v468
      %508 = vmatpush.bf16.msra.mxu0 %v465
      %509 = vmatpush.bf16.msra.mxu0 %v462
      %510 = vmatpush.bf16.msra.mxu0 %v459
      %511 = vmatpush.bf16.msra.mxu0 %v456
      %512 = vmatmul.bf16.gmra.mxu0 %v335
      %v513 = vpop.f32.mrf.mxu0
      %v514 = vadd.f32 %v370, %v513
      %v515 = vpop.f32.mrf.mxu0
      %516 = vdwg.mxu0
      %517 = vmatpush.bf16.msra.mxu0 %v478
      %518 = vmatpush.bf16.msra.mxu0 %v475
      %519 = vmatpush.bf16.msra.mxu0 %v472
      %520 = vmatpush.bf16.msra.mxu0 %v469
      %521 = vmatpush.bf16.msra.mxu0 %v466
      %522 = vmatpush.bf16.msra.mxu0 %v463
      %523 = vmatpush.bf16.msra.mxu0 %v460
      %524 = vmatpush.bf16.msra.mxu0 %v457
      %525 = vmatmul.bf16.gmra.mxu0 %v335
      %v526 = vpop.f32.mrf.mxu0
      %v527 = vadd.f32 %v371, %v526
      %v528 = vpop.f32.mrf.mxu0
      %529 = vdwg.mxu0
      %530 = vmatpush.bf16.msra.mxu0 %v479
      %531 = vmatpush.bf16.msra.mxu0 %v476
      %532 = vmatpush.bf16.msra.mxu0 %v473
      %533 = vmatpush.bf16.msra.mxu0 %v470
      %534 = vmatpush.bf16.msra.mxu0 %v467
      %535 = vmatpush.bf16.msra.mxu0 %v464
      %536 = vmatpush.bf16.msra.mxu0 %v461
      %537 = vmatpush.bf16.msra.mxu0 %v458
      %538 = vmatmul.bf16.gmra.mxu0 %v335
      %v539 = vpop.f32.mrf.mxu0
      %v540 = vadd.f32 %v372, %v539
      %v541 = vpop.f32.mrf.mxu0
      %542 = vdwg.mxu0
      %v543 = vadd.f32 %v306, %v514
      %v544 = vxor.u32 %v543, 2147483648
      %v545 = vmul.f32 %v544, 1.442695
      %v546 = vpow.pop %v545
      %v547 = vadd.f32 %v546, 1.0
      %v548 = vrcp.pop %v547
      %v549 = vmul.f32 %v547, %v548
      %v550 = vsub.f32 1.0, %v549
      %v551 = vmul.f32 %v548, %v550
      %v552 = vadd.f32 %v548, %v551
      %vm553 = vweird.f32 %v547
      %vm554 = vweird.f32 %v548
      %vm555 = vmor %vm553, %vm554
      %v556 = vsel %vm555, %v548, %v552
      %v557 = vand.u32 2147483647, %v547
      %vm558 = vcmp.eq.f32.partialorder %v557, 8.507059e+37
      %v559 = vand.u32 %v547, 2147483648
      %v560 = vor.u32 1.1754944e-38, %v559
      %v561 = vsel %vm558, %v560, %v556
      %v562 = vmul.f32 1.0, %v561
      %v563 = vadd.f32 %v319, %v527
      %v564 = vxor.u32 %v563, 2147483648
      %v565 = vmul.f32 %v564, 1.442695
      %v566 = vpow.pop %v565
      %v567 = vadd.f32 %v566, 1.0
      %v568 = vrcp.pop %v567
      %v569 = vmul.f32 %v567, %v568
      %v570 = vsub.f32 1.0, %v569
      %v571 = vmul.f32 %v568, %v570
      %v572 = vadd.f32 %v568, %v571
      %vm573 = vweird.f32 %v567
      %vm574 = vweird.f32 %v568
      %vm575 = vmor %vm573, %vm574
      %v576 = vsel %vm575, %v568, %v572
      %v577 = vand.u32 2147483647, %v567
      %vm578 = vcmp.eq.f32.partialorder %v577, 8.507059e+37
      %v579 = vand.u32 %v567, 2147483648
      %v580 = vor.u32 1.1754944e-38, %v579
      %v581 = vsel %vm578, %v580, %v576
      %v582 = vmul.f32 1.0, %v581
      %v583 = vmul.f32 %v562, %v540
      %v584 = vadd.f32 %v332, %v583
      %v585 = vtanh.pop %v584
      %v586 = vsub.f32 1.0, %v582
      %v587 = vmul.f32 %v586, %v585
      %v588 = vmul.f32 %v582, %v127
      %v589 = vadd.f32 %v587, %v588
      %590 = vst [vmem:[%s13] sm:$0xff] %v589
      %v591 = vld [vmem:[%s2] sm:$0xf]
      %v592 = vld [vmem:[%s2 + $0x4] sm:$0xf]
      %v593 = vld [vmem:[%s2 + $0x8] sm:$0xf]
      %v594 = vld [vmem:[%s2 + $0xc] sm:$0xf]
      %v595 = vld [vmem:[%s2 + $0x10] sm:$0xf]
      %v596 = vld [vmem:[%s2 + $0x14] sm:$0xf]
      %v597 = vld [vmem:[%s2 + $0x18] sm:$0xf]
      %v598 = vld [vmem:[%s2 + $0x1c] sm:$0xf]
      %v599 = vpack.c.bf16 %v589, %v589
      %v601 = vrot.slane %v599, 3
      %vm602 = vcmask 1040384
      %v605 = vsel %vm602, %v599, %v601
      %vm607 = vcmask 1041409
      %v608 = vsel %vm607, %v599, %v601
      %v610 = vrot.slane %v608, 1
      %vm611 = vcmask 1042434
      %v612 = vsel %vm611, %v599, %v601
      %v614 = vrot.slane %v612, 2
      %vm615 = vcmask 1043459
      %v616 = vsel %vm615, %v599, %v601
      %v618 = vrot.slane %v616, 3
      %v619 = vunpack.i.l.s16 %v605
      %v620 = vunpack.i.h.s16 %v605
      %v621 = vunpack.i.l.s16 %v610
      %v622 = vunpack.i.h.s16 %v610
      %v623 = vunpack.i.l.s16 %v614
      %v624 = vunpack.i.h.s16 %v614
      %v625 = vunpack.i.l.s16 %v618
      %v626 = vunpack.i.h.s16 %v618
      %v627 = vpack.i.b16 %v619, %v619
      %v628 = vperm.slane %v627, 0
      %630 = vmatpush.bf16.xpose.msra.mxu0 0
      %631 = vmatpush.bf16.xpose.msra.mxu0 0
      %632 = vmatpush.bf16.xpose.msra.mxu0 0
      %633 = vmatpush.bf16.xpose.msra.mxu0 0
      %634 = vmatpush.bf16.xpose.msra.mxu0 0
      %635 = vmatpush.bf16.xpose.msra.mxu0 0
      %636 = vmatpush.bf16.xpose.msra.mxu0 0
      %637 = vmatpush.bf16.xpose.msra.mxu0 %v591
      %638 = vmatmul.bf16.gmra.mxu0 %v628
      %v639 = vpop.f32.mrf.mxu0
      %v640 = vadd.f32 0.0, %v639
      %v641 = vpop.f32.mrf.mxu0
      %642 = vdwg.mxu0
      %v643 = vpack.i.b16 %v620, %v620
      %v644 = vperm.slane %v643, 0
      %646 = vmatpush.bf16.xpose.msra.mxu0 0
      %647 = vmatpush.bf16.xpose.msra.mxu0 0
      %648 = vmatpush.bf16.xpose.msra.mxu0 0
      %649 = vmatpush.bf16.xpose.msra.mxu0 0
      %650 = vmatpush.bf16.xpose.msra.mxu0 0
      %651 = vmatpush.bf16.xpose.msra.mxu0 0
      %652 = vmatpush.bf16.xpose.msra.mxu0 0
      %653 = vmatpush.bf16.xpose.msra.mxu0 %v592
      %654 = vmatmul.bf16.gmra.mxu0 %v644
      %v655 = vpop.f32.mrf.mxu0
      %v656 = vadd.f32 0.0, %v655
      %v657 = vpop.f32.mrf.mxu0
      %658 = vdwg.mxu0
      %v659 = vpack.i.b16 %v621, %v621
      %v660 = vperm.slane %v659, 0
      %662 = vmatpush.bf16.xpose.msra.mxu0 0
      %663 = vmatpush.bf16.xpose.msra.mxu0 0
      %664 = vmatpush.bf16.xpose.msra.mxu0 0
      %665 = vmatpush.bf16.xpose.msra.mxu0 0
      %666 = vmatpush.bf16.xpose.msra.mxu0 0
      %667 = vmatpush.bf16.xpose.msra.mxu0 0
      %668 = vmatpush.bf16.xpose.msra.mxu0 0
      %669 = vmatpush.bf16.xpose.msra.mxu0 %v593
      %670 = vmatmul.bf16.gmra.mxu0 %v660
      %v671 = vpop.f32.mrf.mxu0
      %v672 = vadd.f32 0.0, %v671
      %v673 = vpop.f32.mrf.mxu0
      %674 = vdwg.mxu0
      %v675 = vpack.i.b16 %v622, %v622
      %v676 = vperm.slane %v675, 0
      %678 = vmatpush.bf16.xpose.msra.mxu0 0
      %679 = vmatpush.bf16.xpose.msra.mxu0 0
      %680 = vmatpush.bf16.xpose.msra.mxu0 0
      %681 = vmatpush.bf16.xpose.msra.mxu0 0
      %682 = vmatpush.bf16.xpose.msra.mxu0 0
      %683 = vmatpush.bf16.xpose.msra.mxu0 0
      %684 = vmatpush.bf16.xpose.msra.mxu0 0
      %685 = vmatpush.bf16.xpose.msra.mxu0 %v594
      %686 = vmatmul.bf16.gmra.mxu0 %v676
      %v687 = vpop.f32.mrf.mxu0
      %v688 = vadd.f32 0.0, %v687
      %v689 = vpop.f32.mrf.mxu0
      %690 = vdwg.mxu0
      %v691 = vpack.i.b16 %v623, %v623
      %v692 = vperm.slane %v691, 0
      %694 = vmatpush.bf16.xpose.msra.mxu0 0
      %695 = vmatpush.bf16.xpose.msra.mxu0 0
      %696 = vmatpush.bf16.xpose.msra.mxu0 0
      %697 = vmatpush.bf16.xpose.msra.mxu0 0
      %698 = vmatpush.bf16.xpose.msra.mxu0 0
      %699 = vmatpush.bf16.xpose.msra.mxu0 0
      %700 = vmatpush.bf16.xpose.msra.mxu0 0
      %701 = vmatpush.bf16.xpose.msra.mxu0 %v595
      %702 = vmatmul.bf16.gmra.mxu0 %v692
      %v703 = vpop.f32.mrf.mxu0
      %v704 = vadd.f32 0.0, %v703
      %v705 = vpop.f32.mrf.mxu0
      %706 = vdwg.mxu0
      %v707 = vpack.i.b16 %v624, %v624
      %v708 = vperm.slane %v707, 0
      %710 = vmatpush.bf16.xpose.msra.mxu0 0
      %711 = vmatpush.bf16.xpose.msra.mxu0 0
      %712 = vmatpush.bf16.xpose.msra.mxu0 0
      %713 = vmatpush.bf16.xpose.msra.mxu0 0
      %714 = vmatpush.bf16.xpose.msra.mxu0 0
      %715 = vmatpush.bf16.xpose.msra.mxu0 0
      %716 = vmatpush.bf16.xpose.msra.mxu0 0
      %717 = vmatpush.bf16.xpose.msra.mxu0 %v596
      %718 = vmatmul.bf16.gmra.mxu0 %v708
      %v719 = vpop.f32.mrf.mxu0
      %v720 = vadd.f32 0.0, %v719
      %v721 = vpop.f32.mrf.mxu0
      %722 = vdwg.mxu0
      %v723 = vpack.i.b16 %v625, %v625
      %v724 = vperm.slane %v723, 0
      %726 = vmatpush.bf16.xpose.msra.mxu0 0
      %727 = vmatpush.bf16.xpose.msra.mxu0 0
      %728 = vmatpush.bf16.xpose.msra.mxu0 0
      %729 = vmatpush.bf16.xpose.msra.mxu0 0
      %730 = vmatpush.bf16.xpose.msra.mxu0 0
      %731 = vmatpush.bf16.xpose.msra.mxu0 0
      %732 = vmatpush.bf16.xpose.msra.mxu0 0
      %733 = vmatpush.bf16.xpose.msra.mxu0 %v597
      %734 = vmatmul.bf16.gmra.mxu0 %v724
      %v735 = vpop.f32.mrf.mxu0
      %v736 = vadd.f32 0.0, %v735
      %v737 = vpop.f32.mrf.mxu0
      %738 = vdwg.mxu0
      %v739 = vpack.i.b16 %v626, %v626
      %v740 = vperm.slane %v739, 0
      %742 = vmatpush.bf16.xpose.msra.mxu0 0
      %743 = vmatpush.bf16.xpose.msra.mxu0 0
      %744 = vmatpush.bf16.xpose.msra.mxu0 0
      %745 = vmatpush.bf16.xpose.msra.mxu0 0
      %746 = vmatpush.bf16.xpose.msra.mxu0 0
      %747 = vmatpush.bf16.xpose.msra.mxu0 0
      %748 = vmatpush.bf16.xpose.msra.mxu0 0
      %749 = vmatpush.bf16.xpose.msra.mxu0 %v598
      %750 = vmatmul.bf16.gmra.mxu0 %v740
      %v751 = vpop.f32.mrf.mxu0
      %v752 = vadd.f32 0.0, %v751
      %v753 = vpop.f32.mrf.mxu0
      %754 = vdwg.mxu0
      %vm755 = vcmask 57344
      %v756 = vsel %vm755, %v640, -inf
      %757 = vmax.xlane.f32.xlu0 %v756
      %v758 = vpop.xlane.xlu0 %757
      %v759 = vsel %vm755, %v656, -inf
      %760 = vmax.xlane.f32.xlu0 %v759
      %v761 = vpop.xlane.xlu0 %760
      %v762 = vsel %vm755, %v672, -inf
      %763 = vmax.xlane.f32.xlu0 %v762
      %v764 = vpop.xlane.xlu0 %763
      %v765 = vsel %vm755, %v688, -inf
      %766 = vmax.xlane.f32.xlu0 %v765
      %v767 = vpop.xlane.xlu0 %766
      %v768 = vsel %vm755, %v704, -inf
      %769 = vmax.xlane.f32.xlu0 %v768
      %v770 = vpop.xlane.xlu0 %769
      %v771 = vsel %vm755, %v720, -inf
      %772 = vmax.xlane.f32.xlu0 %v771
      %v773 = vpop.xlane.xlu0 %772
      %v774 = vsel %vm755, %v736, -inf
      %775 = vmax.xlane.f32.xlu0 %v774
      %v776 = vpop.xlane.xlu0 %775
      %v777 = vsel %vm755, %v752, -inf
      %778 = vmax.xlane.f32.xlu0 %v777
      %v779 = vpop.xlane.xlu0 %778
      %v780 = vsub.f32 %v640, %v758
      %v781 = vsub.f32 %v656, %v761
      %v782 = vsub.f32 %v672, %v764
      %v783 = vsub.f32 %v688, %v767
      %v784 = vsub.f32 %v704, %v770
      %v785 = vsub.f32 %v720, %v773
      %v786 = vsub.f32 %v736, %v776
      %v787 = vsub.f32 %v752, %v779
      %v788 = vmul.f32 %v780, 1.442695
      %v789 = vpow.pop %v788
      %v790 = vmul.f32 %v781, 1.442695
      %v791 = vpow.pop %v790
      %v792 = vmul.f32 %v782, 1.442695
      %v793 = vpow.pop %v792
      %v794 = vmul.f32 %v783, 1.442695
      %v795 = vpow.pop %v794
      %v796 = vmul.f32 %v784, 1.442695
      %v797 = vpow.pop %v796
      %v798 = vmul.f32 %v785, 1.442695
      %v799 = vpow.pop %v798
      %v800 = vmul.f32 %v786, 1.442695
      %v801 = vpow.pop %v800
      %v802 = vmul.f32 %v787, 1.442695
      %v803 = vpow.pop %v802
      %v804 = vsel %vm755, %v789, 0.0
      %805 = vadd.xlane.f32.xlu0 %v804
      %v806 = vpop.xlane.xlu0 %805
      %v807 = vsel %vm755, %v791, 0.0
      %808 = vadd.xlane.f32.xlu0 %v807
      %v809 = vpop.xlane.xlu0 %808
      %v810 = vsel %vm755, %v793, 0.0
      %811 = vadd.xlane.f32.xlu0 %v810
      %v812 = vpop.xlane.xlu0 %811
      %v813 = vsel %vm755, %v795, 0.0
      %814 = vadd.xlane.f32.xlu0 %v813
      %v815 = vpop.xlane.xlu0 %814
      %v816 = vsel %vm755, %v797, 0.0
      %817 = vadd.xlane.f32.xlu0 %v816
      %v818 = vpop.xlane.xlu0 %817
      %v819 = vsel %vm755, %v799, 0.0
      %820 = vadd.xlane.f32.xlu0 %v819
      %v821 = vpop.xlane.xlu0 %820
      %v822 = vsel %vm755, %v801, 0.0
      %823 = vadd.xlane.f32.xlu0 %v822
      %v824 = vpop.xlane.xlu0 %823
      %v825 = vsel %vm755, %v803, 0.0
      %826 = vadd.xlane.f32.xlu0 %v825
      %v827 = vpop.xlane.xlu0 %826
      %v828 = vrcp.pop %v806
      %v829 = vmul.f32 %v806, %v828
      %v830 = vsub.f32 1.0, %v829
      %v831 = vmul.f32 %v828, %v830
      %v832 = vadd.f32 %v828, %v831
      %vm833 = vweird.f32 %v806
      %vm834 = vweird.f32 %v828
      %vm835 = vmor %vm833, %vm834
      %v836 = vsel %vm835, %v828, %v832
      %v837 = vand.u32 2147483647, %v806
      %vm838 = vcmp.eq.f32.partialorder %v837, 8.507059e+37
      %v839 = vand.u32 %v806, 2147483648
      %v840 = vor.u32 1.1754944e-38, %v839
      %v841 = vsel %vm838, %v840, %v836
      %v842 = vmul.f32 %v789, %v841
      %v843 = vrcp.pop %v809
      %v844 = vmul.f32 %v809, %v843
      %v845 = vsub.f32 1.0, %v844
      %v846 = vmul.f32 %v843, %v845
      %v847 = vadd.f32 %v843, %v846
      %vm848 = vweird.f32 %v809
      %vm849 = vweird.f32 %v843
      %vm850 = vmor %vm848, %vm849
      %v851 = vsel %vm850, %v843, %v847
      %v852 = vand.u32 2147483647, %v809
      %vm853 = vcmp.eq.f32.partialorder %v852, 8.507059e+37
      %v854 = vand.u32 %v809, 2147483648
      %v855 = vor.u32 1.1754944e-38, %v854
      %v856 = vsel %vm853, %v855, %v851
      %v857 = vmul.f32 %v791, %v856
      %v858 = vrcp.pop %v812
      %v859 = vmul.f32 %v812, %v858
      %v860 = vsub.f32 1.0, %v859
      %v861 = vmul.f32 %v858, %v860
      %v862 = vadd.f32 %v858, %v861
      %vm863 = vweird.f32 %v812
      %vm864 = vweird.f32 %v858
      %vm865 = vmor %vm863, %vm864
      %v866 = vsel %vm865, %v858, %v862
      %v867 = vand.u32 2147483647, %v812
      %vm868 = vcmp.eq.f32.partialorder %v867, 8.507059e+37
      %v869 = vand.u32 %v812, 2147483648
      %v870 = vor.u32 1.1754944e-38, %v869
      %v871 = vsel %vm868, %v870, %v866
      %v872 = vmul.f32 %v793, %v871
      %v873 = vrcp.pop %v815
      %v874 = vmul.f32 %v815, %v873
      %v875 = vsub.f32 1.0, %v874
      %v876 = vmul.f32 %v873, %v875
      %v877 = vadd.f32 %v873, %v876
      %vm878 = vweird.f32 %v815
      %vm879 = vweird.f32 %v873
      %vm880 = vmor %vm878, %vm879
      %v881 = vsel %vm880, %v873, %v877
      %v882 = vand.u32 2147483647, %v815
      %vm883 = vcmp.eq.f32.partialorder %v882, 8.507059e+37
      %v884 = vand.u32 %v815, 2147483648
      %v885 = vor.u32 1.1754944e-38, %v884
      %v886 = vsel %vm883, %v885, %v881
      %v887 = vmul.f32 %v795, %v886
      %v888 = vrcp.pop %v818
      %v889 = vmul.f32 %v818, %v888
      %v890 = vsub.f32 1.0, %v889
      %v891 = vmul.f32 %v888, %v890
      %v892 = vadd.f32 %v888, %v891
      %vm893 = vweird.f32 %v818
      %vm894 = vweird.f32 %v888
      %vm895 = vmor %vm893, %vm894
      %v896 = vsel %vm895, %v888, %v892
      %v897 = vand.u32 2147483647, %v818
      %vm898 = vcmp.eq.f32.partialorder %v897, 8.507059e+37
      %v899 = vand.u32 %v818, 2147483648
      %v900 = vor.u32 1.1754944e-38, %v899
      %v901 = vsel %vm898, %v900, %v896
      %v902 = vmul.f32 %v797, %v901
      %v903 = vrcp.pop %v821
      %v904 = vmul.f32 %v821, %v903
      %v905 = vsub.f32 1.0, %v904
      %v906 = vmul.f32 %v903, %v905
      %v907 = vadd.f32 %v903, %v906
      %vm908 = vweird.f32 %v821
      %vm909 = vweird.f32 %v903
      %vm910 = vmor %vm908, %vm909
      %v911 = vsel %vm910, %v903, %v907
      %v912 = vand.u32 2147483647, %v821
      %vm913 = vcmp.eq.f32.partialorder %v912, 8.507059e+37
      %v914 = vand.u32 %v821, 2147483648
      %v915 = vor.u32 1.1754944e-38, %v914
      %v916 = vsel %vm913, %v915, %v911
      %v917 = vmul.f32 %v799, %v916
      %v918 = vrcp.pop %v824
      %v919 = vmul.f32 %v824, %v918
      %v920 = vsub.f32 1.0, %v919
      %v921 = vmul.f32 %v918, %v920
      %v922 = vadd.f32 %v918, %v921
      %vm923 = vweird.f32 %v824
      %vm924 = vweird.f32 %v918
      %vm925 = vmor %vm923, %vm924
      %v926 = vsel %vm925, %v918, %v922
      %v927 = vand.u32 2147483647, %v824
      %vm928 = vcmp.eq.f32.partialorder %v927, 8.507059e+37
      %v929 = vand.u32 %v824, 2147483648
      %v930 = vor.u32 1.1754944e-38, %v929
      %v931 = vsel %vm928, %v930, %v926
      %v932 = vmul.f32 %v801, %v931
      %v933 = vrcp.pop %v827
      %v934 = vmul.f32 %v827, %v933
      %v935 = vsub.f32 1.0, %v934
      %v936 = vmul.f32 %v933, %v935
      %v937 = vadd.f32 %v933, %v936
      %vm938 = vweird.f32 %v827
      %vm939 = vweird.f32 %v933
      %vm940 = vmor %vm938, %vm939
      %v941 = vsel %vm940, %v933, %v937
      %v942 = vand.u32 2147483647, %v827
      %vm943 = vcmp.eq.f32.partialorder %v942, 8.507059e+37
      %v944 = vand.u32 %v827, 2147483648
      %v945 = vor.u32 1.1754944e-38, %v944
      %v946 = vsel %vm943, %v945, %v941
      %v947 = vmul.f32 %v803, %v946
      %v948 = vpack.c.bf16 %v842, %v842
      %v949 = vpack.c.bf16 %v857, %v857
      %v950 = vpack.c.bf16 %v872, %v872
      %v951 = vpack.c.bf16 %v887, %v887
      %v952 = vpack.c.bf16 %v902, %v902
      %v953 = vpack.c.bf16 %v917, %v917
      %v954 = vpack.c.bf16 %v932, %v932
      %v955 = vpack.c.bf16 %v947, %v947
      %vm956 = vcmask 64512
      %v958 = vsel %vm956, %v948, 0
      %vm960 = vcmask 1043456
      %v962 = vsel %vm960, %v591, 0
      %964 = vmatpush.bf16.msra.mxu0 0
      %965 = vmatpush.bf16.msra.mxu0 0
      %966 = vmatpush.bf16.msra.mxu0 0
      %967 = vmatpush.bf16.msra.mxu0 0
      %968 = vmatpush.bf16.msra.mxu0 0
      %969 = vmatpush.bf16.msra.mxu0 0
      %970 = vmatpush.bf16.msra.mxu0 0
      %971 = vmatpush.bf16.msra.mxu0 %v962
      %972 = vmatmul.bf16.gmra.mxu0 %v958
      %v973 = vpop.f32.mrf.mxu0
      %v974 = vadd.f32 0.0, %v973
      %v975 = vpop.f32.mrf.mxu0
      %976 = vdwg.mxu0
      %v978 = vsel %vm956, %v949, 0
      %v981 = vsel %vm960, %v592, 0
      %983 = vmatpush.bf16.msra.mxu0 0
      %984 = vmatpush.bf16.msra.mxu0 0
      %985 = vmatpush.bf16.msra.mxu0 0
      %986 = vmatpush.bf16.msra.mxu0 0
      %987 = vmatpush.bf16.msra.mxu0 0
      %988 = vmatpush.bf16.msra.mxu0 0
      %989 = vmatpush.bf16.msra.mxu0 0
      %990 = vmatpush.bf16.msra.mxu0 %v981
      %991 = vmatmul.bf16.gmra.mxu0 %v978
      %v992 = vpop.f32.mrf.mxu0
      %v993 = vadd.f32 0.0, %v992
      %v994 = vpop.f32.mrf.mxu0
      %995 = vdwg.mxu0
      %v997 = vsel %vm956, %v950, 0
      %v1000 = vsel %vm960, %v593, 0
      %1002 = vmatpush.bf16.msra.mxu0 0
      %1003 = vmatpush.bf16.msra.mxu0 0
      %1004 = vmatpush.bf16.msra.mxu0 0
      %1005 = vmatpush.bf16.msra.mxu0 0
      %1006 = vmatpush.bf16.msra.mxu0 0
      %1007 = vmatpush.bf16.msra.mxu0 0
      %1008 = vmatpush.bf16.msra.mxu0 0
      %1009 = vmatpush.bf16.msra.mxu0 %v1000
      %1010 = vmatmul.bf16.gmra.mxu0 %v997
      %v1011 = vpop.f32.mrf.mxu0
      %v1012 = vadd.f32 0.0, %v1011
      %v1013 = vpop.f32.mrf.mxu0
      %1014 = vdwg.mxu0
      %v1016 = vsel %vm956, %v951, 0
      %v1019 = vsel %vm960, %v594, 0
      %1021 = vmatpush.bf16.msra.mxu0 0
      %1022 = vmatpush.bf16.msra.mxu0 0
      %1023 = vmatpush.bf16.msra.mxu0 0
      %1024 = vmatpush.bf16.msra.mxu0 0
      %1025 = vmatpush.bf16.msra.mxu0 0
      %1026 = vmatpush.bf16.msra.mxu0 0
      %1027 = vmatpush.bf16.msra.mxu0 0
      %1028 = vmatpush.bf16.msra.mxu0 %v1019
      %1029 = vmatmul.bf16.gmra.mxu0 %v1016
      %v1030 = vpop.f32.mrf.mxu0
      %v1031 = vadd.f32 0.0, %v1030
      %v1032 = vpop.f32.mrf.mxu0
      %1033 = vdwg.mxu0
      %v1035 = vsel %vm956, %v952, 0
      %v1038 = vsel %vm960, %v595, 0
      %1040 = vmatpush.bf16.msra.mxu0 0
      %1041 = vmatpush.bf16.msra.mxu0 0
      %1042 = vmatpush.bf16.msra.mxu0 0
      %1043 = vmatpush.bf16.msra.mxu0 0
      %1044 = vmatpush.bf16.msra.mxu0 0
      %1045 = vmatpush.bf16.msra.mxu0 0
      %1046 = vmatpush.bf16.msra.mxu0 0
      %1047 = vmatpush.bf16.msra.mxu0 %v1038
      %1048 = vmatmul.bf16.gmra.mxu0 %v1035
      %v1049 = vpop.f32.mrf.mxu0
      %v1050 = vadd.f32 0.0, %v1049
      %v1051 = vpop.f32.mrf.mxu0
      %1052 = vdwg.mxu0
      %v1054 = vsel %vm956, %v953, 0
      %v1057 = vsel %vm960, %v596, 0
      %1059 = vmatpush.bf16.msra.mxu0 0
      %1060 = vmatpush.bf16.msra.mxu0 0
      %1061 = vmatpush.bf16.msra.mxu0 0
      %1062 = vmatpush.bf16.msra.mxu0 0
      %1063 = vmatpush.bf16.msra.mxu0 0
      %1064 = vmatpush.bf16.msra.mxu0 0
      %1065 = vmatpush.bf16.msra.mxu0 0
      %1066 = vmatpush.bf16.msra.mxu0 %v1057
      %1067 = vmatmul.bf16.gmra.mxu0 %v1054
      %v1068 = vpop.f32.mrf.mxu0
      %v1069 = vadd.f32 0.0, %v1068
      %v1070 = vpop.f32.mrf.mxu0
      %1071 = vdwg.mxu0
      %v1073 = vsel %vm956, %v954, 0
      %v1076 = vsel %vm960, %v597, 0
      %1078 = vmatpush.bf16.msra.mxu0 0
      %1079 = vmatpush.bf16.msra.mxu0 0
      %1080 = vmatpush.bf16.msra.mxu0 0
      %1081 = vmatpush.bf16.msra.mxu0 0
      %1082 = vmatpush.bf16.msra.mxu0 0
      %1083 = vmatpush.bf16.msra.mxu0 0
      %1084 = vmatpush.bf16.msra.mxu0 0
      %1085 = vmatpush.bf16.msra.mxu0 %v1076
      %1086 = vmatmul.bf16.gmra.mxu0 %v1073
      %v1087 = vpop.f32.mrf.mxu0
      %v1088 = vadd.f32 0.0, %v1087
      %v1089 = vpop.f32.mrf.mxu0
      %1090 = vdwg.mxu0
      %v1092 = vsel %vm956, %v955, 0
      %v1095 = vsel %vm960, %v598, 0
      %1097 = vmatpush.bf16.msra.mxu0 0
      %1098 = vmatpush.bf16.msra.mxu0 0
      %1099 = vmatpush.bf16.msra.mxu0 0
      %1100 = vmatpush.bf16.msra.mxu0 0
      %1101 = vmatpush.bf16.msra.mxu0 0
      %1102 = vmatpush.bf16.msra.mxu0 0
      %1103 = vmatpush.bf16.msra.mxu0 0
      %1104 = vmatpush.bf16.msra.mxu0 %v1095
      %1105 = vmatmul.bf16.gmra.mxu0 %v1092
      %v1106 = vpop.f32.mrf.mxu0
      %v1107 = vadd.f32 0.0, %v1106
      %v1108 = vpop.f32.mrf.mxu0
      %1109 = vdwg.mxu0
      %v1110 = vld [vmem:[#allocation7] sm:$0xf]
      %v1111 = vld [vmem:[#allocation7 + $0x4] sm:$0xf]
      %v1112 = vld [vmem:[#allocation7 + $0x8] sm:$0xf]
      %v1113 = vld [vmem:[#allocation7 + $0xc] sm:$0xf]
      %v1114 = vld [vmem:[#allocation7 + $0x10] sm:$0xf]
      %v1115 = vld [vmem:[#allocation7 + $0x14] sm:$0xf]
      %v1116 = vld [vmem:[#allocation7 + $0x18] sm:$0xf]
      %v1117 = vld [vmem:[#allocation7 + $0x1c] sm:$0xf]
      %v1118 = vld [vmem:[#allocation7 + $0x20] sm:$0xf]
      %v1119 = vld [vmem:[#allocation7 + $0x24] sm:$0xf]
      %v1120 = vld [vmem:[#allocation7 + $0x28] sm:$0xf]
      %v1121 = vld [vmem:[#allocation7 + $0x2c] sm:$0xf]
      %v1122 = vld [vmem:[#allocation7 + $0x30] sm:$0xf]
      %v1123 = vld [vmem:[#allocation7 + $0x34] sm:$0xf]
      %v1124 = vld [vmem:[#allocation7 + $0x38] sm:$0xf]
      %v1125 = vld [vmem:[#allocation7 + $0x3c] sm:$0xf]
      %v1126 = vpack.c.bf16 %v974, %v974
      %v1127 = vpack.c.bf16 %v993, %v993
      %v1128 = vpack.c.bf16 %v1012, %v1012
      %v1129 = vpack.c.bf16 %v1031, %v1031
      %v1130 = vpack.c.bf16 %v1050, %v1050
      %v1131 = vpack.c.bf16 %v1069, %v1069
      %v1132 = vpack.c.bf16 %v1088, %v1088
      %v1133 = vpack.c.bf16 %v1107, %v1107
      %v1134 = vld [vmem:[#allocation8] sm:$0xf]
      %v1135 = vld [vmem:[#allocation8 + $0x4] sm:$0xf]
      %v1136 = vld [vmem:[#allocation8 + $0x8] sm:$0xf]
      %v1137 = vld [vmem:[#allocation8 + $0xc] sm:$0xf]
      %v1138 = vld [vmem:[#allocation8 + $0x10] sm:$0xf]
      %v1139 = vld [vmem:[#allocation8 + $0x14] sm:$0xf]
      %v1140 = vld [vmem:[#allocation8 + $0x18] sm:$0xf]
      %v1141 = vld [vmem:[#allocation8 + $0x1c] sm:$0xf]
      %v1142 = vld [vmem:[#allocation8 + $0x20] sm:$0xf]
      %v1143 = vld [vmem:[#allocation8 + $0x24] sm:$0xf]
      %v1144 = vld [vmem:[#allocation8 + $0x28] sm:$0xf]
      %v1145 = vld [vmem:[#allocation8 + $0x2c] sm:$0xf]
      %v1146 = vld [vmem:[#allocation8 + $0x30] sm:$0xf]
      %v1147 = vld [vmem:[#allocation8 + $0x34] sm:$0xf]
      %v1148 = vld [vmem:[#allocation8 + $0x38] sm:$0xf]
      %v1149 = vld [vmem:[#allocation8 + $0x3c] sm:$0xf]
      %v1158 = vunpack.c.l.b16 %v1126
      %v1159 = vunpack.c.l.b16 %v1127
      %v1160 = vunpack.c.l.b16 %v1128
      %v1161 = vunpack.c.l.b16 %v1129
      %v1162 = vunpack.c.l.b16 %v1130
      %v1163 = vunpack.c.l.b16 %v1131
      %v1164 = vunpack.c.l.b16 %v1132
      %v1165 = vunpack.c.l.b16 %v1133
      %v1166 = vrot.slane %v1159, 7
      %v1167 = vsel %vm607, %v1166, %v1158
      %v1168 = vrot.slane %v1160, 6
      %v1169 = vsel %vm611, %v1168, %v1167
      %v1170 = vrot.slane %v1161, 5
      %v1171 = vsel %vm615, %v1170, %v1169
      %v1172 = vrot.slane %v1162, 4
      %vm1173 = vcmask 1044484
      %v1174 = vsel %vm1173, %v1172, %v1171
      %v1175 = vrot.slane %v1163, 3
      %vm1176 = vcmask 1045509
      %v1177 = vsel %vm1176, %v1175, %v1174
      %v1178 = vrot.slane %v1164, 2
      %vm1179 = vcmask 1046534
      %v1180 = vsel %vm1179, %v1178, %v1177
      %v1181 = vrot.slane %v1165, 1
      %vm1182 = vcmask 1047559
      %v1183 = vsel %vm1182, %v1181, %v1180
      %v1184 = vpack.c.b16 %v1183, %v1183
      %v1202 = vunpack.c.l.b16 %v1134
      %v1203 = vunpack.c.l.b16 %v1135
      %v1204 = vunpack.c.l.b16 %v1136
      %v1205 = vunpack.c.l.b16 %v1137
      %v1206 = vunpack.c.l.b16 %v1138
      %v1207 = vunpack.c.l.b16 %v1139
      %v1208 = vunpack.c.l.b16 %v1140
      %v1209 = vunpack.c.l.b16 %v1141
      %v1210 = vunpack.c.l.b16 %v1142
      %v1211 = vunpack.c.l.b16 %v1143
      %v1212 = vunpack.c.l.b16 %v1144
      %v1213 = vunpack.c.l.b16 %v1145
      %v1214 = vunpack.c.l.b16 %v1146
      %v1215 = vunpack.c.l.b16 %v1147
      %v1216 = vunpack.c.l.b16 %v1148
      %v1217 = vunpack.c.l.b16 %v1149
      %v1218 = vpack.c.b16 %v1203, %v1202
      %v1219 = vpack.c.b16 %v1205, %v1204
      %v1220 = vpack.c.b16 %v1207, %v1206
      %v1221 = vpack.c.b16 %v1209, %v1208
      %v1222 = vpack.c.b16 %v1211, %v1210
      %v1223 = vpack.c.b16 %v1213, %v1212
      %v1224 = vpack.c.b16 %v1215, %v1214
      %v1225 = vpack.c.b16 %v1217, %v1216
      %1234 = vmatpush.bf16.msra.mxu0 %v1225
      %1235 = vmatpush.bf16.msra.mxu0 %v1224
      %1236 = vmatpush.bf16.msra.mxu0 %v1223
      %1237 = vmatpush.bf16.msra.mxu0 %v1222
      %1238 = vmatpush.bf16.msra.mxu0 %v1221
      %1239 = vmatpush.bf16.msra.mxu0 %v1220
      %1240 = vmatpush.bf16.msra.mxu0 %v1219
      %1241 = vmatpush.bf16.msra.mxu0 %v1218
      %1242 = vmatmul.bf16.gmra.mxu0 %v1184
      %v1243 = vpop.f32.mrf.mxu0
      %v1244 = vadd.f32 0.0, %v1243
      %v1245 = vpop.f32.mrf.mxu0
      %1246 = vdwg.mxu0
      %v1263 = vunpack.c.l.b16 %v1110
      %v1264 = vunpack.c.l.b16 %v1111
      %v1265 = vunpack.c.l.b16 %v1112
      %v1266 = vunpack.c.l.b16 %v1113
      %v1267 = vunpack.c.l.b16 %v1114
      %v1268 = vunpack.c.l.b16 %v1115
      %v1269 = vunpack.c.l.b16 %v1116
      %v1270 = vunpack.c.l.b16 %v1117
      %v1271 = vunpack.c.l.b16 %v1118
      %v1272 = vunpack.c.l.b16 %v1119
      %v1273 = vunpack.c.l.b16 %v1120
      %v1274 = vunpack.c.l.b16 %v1121
      %v1275 = vunpack.c.l.b16 %v1122
      %v1276 = vunpack.c.l.b16 %v1123
      %v1277 = vunpack.c.l.b16 %v1124
      %v1278 = vunpack.c.l.b16 %v1125
      %v1279 = vpack.c.b16 %v1264, %v1263
      %v1280 = vpack.c.b16 %v1266, %v1265
      %v1281 = vpack.c.b16 %v1268, %v1267
      %v1282 = vpack.c.b16 %v1270, %v1269
      %v1283 = vpack.c.b16 %v1272, %v1271
      %v1284 = vpack.c.b16 %v1274, %v1273
      %v1285 = vpack.c.b16 %v1276, %v1275
      %v1286 = vpack.c.b16 %v1278, %v1277
      %1295 = vmatpush.bf16.msra.mxu0 %v1286
      %1296 = vmatpush.bf16.msra.mxu0 %v1285
      %1297 = vmatpush.bf16.msra.mxu0 %v1284
      %1298 = vmatpush.bf16.msra.mxu0 %v1283
      %1299 = vmatpush.bf16.msra.mxu0 %v1282
      %1300 = vmatpush.bf16.msra.mxu0 %v1281
      %1301 = vmatpush.bf16.msra.mxu0 %v1280
      %1302 = vmatpush.bf16.msra.mxu0 %v1279
      %1303 = vmatmul.bf16.gmra.mxu0 %v599
      %v1304 = vpop.f32.mrf.mxu0
      %v1305 = vadd.f32 %v1244, %v1304
      %v1306 = vpop.f32.mrf.mxu0
      %1307 = vdwg.mxu0
      %v1308 = vld [vmem:[%s9] sm:$0x1]
      %v1310 = vperm.slane %v1308, 0
      %v1312 = vadd.f32 %v1305, %v1310
      %v1313 = vtanh.pop %v1312
      %v1314 = vpack.c.bf16 %v1313, %v1313
      %1315 = vst [vmem:[#allocation2] sm:$0xf] %v1314
    $region73: #{luong_attn_decoder_step.1} parent=1 // pred_fallthru
      _
    %v1316 = vld [vmem:[#allocation2] sm:$0xf]
    %v1317 = vld [vmem:[#allocation10] sm:$0xf]
    %v1318 = vld [vmem:[#allocation10 + $0x4] sm:$0xf]
    %v1319 = vld [vmem:[#allocation10 + $0x8] sm:$0xf]
    %v1320 = vld [vmem:[#allocation10 + $0xc] sm:$0xf]
    %v1321 = vld [vmem:[#allocation10 + $0x10] sm:$0xf]
    %v1322 = vld [vmem:[#allocation10 + $0x14] sm:$0xf]
    %v1323 = vld [vmem:[#allocation10 + $0x18] sm:$0xf]
    %v1324 = vld [vmem:[#allocation10 + $0x1c] sm:$0xf]
    %v1325 = vld [vmem:[#allocation10 + $0x20] sm:$0xf]
    %v1326 = vld [vmem:[#allocation10 + $0x24] sm:$0xf]
    %v1327 = vld [vmem:[#allocation10 + $0x28] sm:$0xf]
    %v1328 = vld [vmem:[#allocation10 + $0x2c] sm:$0xf]
    %v1329 = vld [vmem:[#allocation10 + $0x30] sm:$0xf]
    %v1330 = vld [vmem:[#allocation10 + $0x34] sm:$0xf]
    %v1331 = vld [vmem:[#allocation10 + $0x38] sm:$0xf]
    %v1332 = vld [vmem:[#allocation10 + $0x3c] sm:$0xf]
    %v1333 = vld [vmem:[%s11] sm:$0x1]
    %v1335 = vperm.slane %v1333, 0
    %v1353 = vunpack.c.l.b16 %v1317
    %v1354 = vunpack.c.l.b16 %v1318
    %v1355 = vunpack.c.l.b16 %v1319
    %v1356 = vunpack.c.l.b16 %v1320
    %v1357 = vunpack.c.l.b16 %v1321
    %v1358 = vunpack.c.l.b16 %v1322
    %v1359 = vunpack.c.l.b16 %v1323
    %v1360 = vunpack.c.l.b16 %v1324
    %v1361 = vunpack.c.l.b16 %v1325
    %v1362 = vunpack.c.l.b16 %v1326
    %v1363 = vunpack.c.l.b16 %v1327
    %v1364 = vunpack.c.l.b16 %v1328
    %v1365 = vunpack.c.l.b16 %v1329
    %v1366 = vunpack.c.l.b16 %v1330
    %v1367 = vunpack.c.l.b16 %v1331
    %v1368 = vunpack.c.l.b16 %v1332
    %v1369 = vpack.c.b16 %v1354, %v1353
    %v1370 = vpack.c.b16 %v1356, %v1355
    %v1371 = vpack.c.b16 %v1358, %v1357
    %v1372 = vpack.c.b16 %v1360, %v1359
    %v1373 = vpack.c.b16 %v1362, %v1361
    %v1374 = vpack.c.b16 %v1364, %v1363
    %v1375 = vpack.c.b16 %v1366, %v1365
    %v1376 = vpack.c.b16 %v1368, %v1367
    %1385 = vmatpush.bf16.msra.mxu0 %v1376
    %1386 = vmatpush.bf16.msra.mxu0 %v1375
    %1387 = vmatpush.bf16.msra.mxu0 %v1374
    %1388 = vmatpush.bf16.msra.mxu0 %v1373
    %1389 = vmatpush.bf16.msra.mxu0 %v1372
    %1390 = vmatpush.bf16.msra.mxu0 %v1371
    %1391 = vmatpush.bf16.msra.mxu0 %v1370
    %1392 = vmatpush.bf16.msra.mxu0 %v1369
    %1393 = vmatmul.bf16.gmra.mxu0 %v1316
    %v1394 = vpop.f32.mrf.mxu0
    %v1395 = vadd.f32 %v1335, %v1394
    %v1396 = vpop.f32.mrf.mxu0
    %1397 = vdwg.mxu0
    %s1398 = smul.u32 0, 8
    %s1399 = scalar_lea.vmem %s12, %s1398
    %1400 = vst [vmem:[%s1399] sm:$0xff] %v1395
    // Predicated region
    $region74: #{luong_attn_decoder_step.1} parent=1 // pred_check
      %p1401 = pneg %p122
    $region75: #{luong_attn_decoder_step.1} parent=1 // pred_check_branch
      %1403 = sbr.rel (%p1401) target = $region77
    $region76: #{luong_attn_decoder_step.1} parent=1 // pred_region
      %v1404 = vld [vmem:[%s12] sm:$0xff]
      %1405 = vmax.xlane.f32.xlu0 %v1404
      %v1406 = vpop.xlane.xlu0 %1405
      %v1407 = vsub.f32 %v1404, %v1406
      %v1408 = vmul.f32 %v1407, 1.442695
      %v1409 = vpow.pop %v1408
      %1410 = vadd.xlane.f32.xlu0 %v1409
      %v1411 = vpop.xlane.xlu0 %1410
      %v1412 = vadd.f32 %v1411, 0.0
      %v1413 = vrcp.pop %v1412
      %v1414 = vmul.f32 %v1412, %v1413
      %v1415 = vsub.f32 1.0, %v1414
      %v1416 = vmul.f32 %v1413, %v1415
      %v1417 = vadd.f32 %v1413, %v1416
      %vm1418 = vweird.f32 %v1412
      %vm1419 = vweird.f32 %v1413
      %vm1420 = vmor %vm1418, %vm1419
      %v1421 = vsel %vm1420, %v1413, %v1417
      %v1422 = vand.u32 2147483647, %v1412
      %vm1423 = vcmp.eq.f32.partialorder %v1422, 8.507059e+37
      %v1424 = vand.u32 %v1412, 2147483648
      %v1425 = vor.u32 1.1754944e-38, %v1424
      %v1426 = vsel %vm1423, %v1425, %v1421
      %v1427 = vmul.f32 %v1409, %v1426
      %1428 = vst [vmem:[%s12] sm:$0xff] %v1427
    $region77: #{luong_attn_decoder_step.1} parent=1 // pred_fallthru
      _
    // Predicated region
    $region78: #{luong_attn_decoder_step.1} parent=1 // pred_check
      _
    $region79: #{luong_attn_decoder_step.1} parent=1 // pred_check_branch
      %1430 = sbr.rel (0) target = $region81
    $region80: #{luong_attn_decoder_step.1} parent=1 // pred_region
      _
    $region81: #{luong_attn_decoder_step.1} parent=1 // pred_fallthru
      _
    // Predicated region
    $region82: #{luong_attn_decoder_step.1} parent=1 // pred_check
      _
    $region83: #{luong_attn_decoder_step.1} parent=1 // pred_check_branch
      %1432 = sbr.rel (0) target = $region85
    $region84: #{luong_attn_decoder_step.1} parent=1 // pred_region
      _
    $region85: #{luong_attn_decoder_step.1} parent=1 // pred_fallthru
      _
    // Predicated region
    $region86: #{luong_attn_decoder_step.1} parent=1 // pred_check
      _
    $region87: #{luong_attn_decoder_step.1} parent=1 // pred_check_branch
      %1434 = sbr.rel (0) target = $region89
    $region88: #{luong_attn_decoder_step.1} parent=1 // pred_region
      _
    $region89: #{luong_attn_decoder_step.1} parent=1 // pred_fallthru
      _
    // Predicated region
    $region90: #{luong_attn_decoder_step.1} parent=1 // pred_check
      _
    $region91: #{luong_attn_decoder_step.1} parent=1 // pred_check_branch
      %1436 = sbr.rel (0) target = $region93
    $region92: #{luong_attn_decoder_step.1} parent=1 // pred_region
      _
    $region93: #{luong_attn_decoder_step.1} parent=1 // pred_fallthru
      _
    %1437 = vsyncpa [#allocation4], 1
    %1438 = vsyncpa [#allocation6], 1
    %1439 = vsyncpa [#allocation9], 1

</llo_original>
